<compile_context>
chip_gen: v7x
topology: tpu7x:2x2x1
jax: 0.10.0
libtpu: 0.0.40
codegen_flags: <defaults>
</compile_context>

<pallas_src>
import jax
import jax.numpy as jnp
from jax.experimental import pallas as pl
from jax.experimental.pallas import tpu as pltpu

H1 = 410
H2 = 200

H1_PAD = 512   # 410 -> 512 (multiple of 128 -> unmasked MXU passes)
H2_PAD = 256   # 200 -> 256


def _round_up(n, m):
    return ((n + m - 1) // m) * m


def _choose_tb(B):
    """Batch tile size.  Multiples of 16 (bf16 sublane packing)."""
    B16 = _round_up(max(B, 1), 16)
    if B16 <= 64:
        # Tiny batch (e.g. the demo): one small tile, grid=(1,).
        return B16
    if B16 <= 2048:
        # Mid-size batch: guarantee at least 2 grid steps so v7x's second
        # TensorCore is not idle, while keeping tiles as large as possible.
        return _round_up(-(-B16 // 2), 16)
    # Large batch: big tile amortizes per-step overhead and MXU fill/drain,
    # still well under the 32 MiB VMEM request (~10 MiB live set).
    return 1024


def _mlp_kernel(x_ref, w1_ref, b1_ref, w2_ref, b2_ref,
                w3_ref, b3_ref, w4_ref, b4_ref, o_ref):
    # layer_in + ReLU   (x_ref is already bf16 -- cast done once in wrapper)
    h = jnp.dot(x_ref[...], w1_ref[...], preferred_element_type=jnp.float32)
    h = jnp.maximum(h + b1_ref[...], 0.0)
    # layer_hidden1 + Dropout(eval=identity) + ReLU
    h = jnp.dot(h.astype(jnp.bfloat16), w2_ref[...],
                preferred_element_type=jnp.float32)
    h = jnp.maximum(h + b2_ref[...], 0.0)
    # layer_hidden2 + Dropout(eval=identity) + ReLU
    h = jnp.dot(h.astype(jnp.bfloat16), w3_ref[...],
                preferred_element_type=jnp.float32)
    h = jnp.maximum(h + b3_ref[...], 0.0)
    # layer_output (no activation)
    out = jnp.dot(h.astype(jnp.bfloat16), w4_ref[...],
                  preferred_element_type=jnp.float32) + b4_ref[...]
    o_ref[...] = out.astype(o_ref.dtype)


def red_arquitectura_b_forward(x, prepared):
    """x: (B, input_size) f32. prepared: output of prepare_params()."""
    B, in_size = x.shape
    IN_PAD = prepared["w1"].shape[0]
    OUT_PAD = prepared["w4"].shape[1]
    out_size = prepared["out_size"]

    TB = _choose_tb(B)
    B_pad = _round_up(B, TB)

    # Cast the streamed input to bf16 once in the wrapper and fuse any needed
    # zero-padding with that cast (no full f32 padding round trip in HBM).
    x_bf = x.astype(jnp.bfloat16)
    pad_rows = B_pad - B
    pad_cols = IN_PAD - in_size
    if pad_rows or pad_cols:
        x_bf = jnp.pad(x_bf, ((0, pad_rows), (0, pad_cols)))

    args = (x_bf,
            prepared["w1"], prepared["b1"],
            prepared["w2"], prepared["b2"],
            prepared["w3"], prepared["b3"],
            prepared["w4"], prepared["b4"])

    def _resident_spec(shape):
        # Full-array block; same block index for every grid step, so the
        # weights/biases stay resident in VMEM across the whole grid
        # (they are DMA'd once, never re-fetched).
        return pl.BlockSpec(shape, lambda i: (0, 0))

    in_specs = [pl.BlockSpec((TB, IN_PAD), lambda i: (i, 0))]
    for a in args[1:]:
        in_specs.append(_resident_spec(a.shape))     # explicit binding per array
    out_spec = pl.BlockSpec((TB, OUT_PAD), lambda i: (i, 0))

    flops = 2 * B_pad * (IN_PAD * H1_PAD + H1_PAD * H1_PAD
                         + H1_PAD * H2_PAD + H2_PAD * OUT_PAD)
    param_bytes = sum(int(prepared[k].size) * prepared[k].dtype.itemsize
                      for k in ("w1", "w2", "w3", "w4",
                                "b1", "b2", "b3", "b4"))
    bytes_accessed = x_bf.size * 2 + param_bytes + B_pad * OUT_PAD * 4

    out_pad = pl.pallas_call(
        _mlp_kernel,
        grid=(B_pad // TB,),
        in_specs=in_specs,
        out_specs=out_spec,
        out_shape=jax.ShapeDtypeStruct((B_pad, OUT_PAD), jnp.float32),
        compiler_params=pltpu.CompilerParams(
            dimension_semantics=("parallel",),
            vmem_limit_bytes=32 * 1024 * 1024),
        cost_estimate=pl.CostEstimate(flops=flops, transcendentals=0,
                                      bytes_accessed=bytes_accessed),
    )(*args)

    return out_pad[:B, :out_size]


def init_params(key, input_size, output_size):
    """Deterministic init mimicking PyTorch nn.Linear (uniform +-1/sqrt(fan_in)).
    Weights stored as (in, out)."""
    dims = [(input_size, H1), (H1, H1), (H1, H2), (H2, output_size)]
    params = {}
    keys = jax.random.split(key, 2 * len(dims))
    for i, (fan_in, fan_out) in enumerate(dims):
        bound = 1.0 / (fan_in ** 0.5)
        params[f"w{i + 1}"] = jax.random.uniform(
            keys[2 * i], (fan_in, fan_out), jnp.float32, -bound, bound)
        params[f"b{i + 1}"] = jax.random.uniform(
            keys[2 * i + 1], (1, fan_out), jnp.float32, -bound, bound)
    return params


def prepare_params(params, input_size, output_size):
    """Zero-pad to MXU-friendly dims; weights -> bf16, biases stay f32."""
    IN_PAD = _round_up(input_size, 128)
    OUT_PAD = _round_up(output_size, 128)
    raw_dims = [(input_size, H1), (H1, H1), (H1, H2), (H2, output_size)]
    pad_dims = [(IN_PAD, H1_PAD), (H1_PAD, H1_PAD), (H1_PAD, H2_PAD),
                (H2_PAD, OUT_PAD)]
    prepared = {"out_size": output_size}
    for i, ((rin, rout), (pin, pout)) in enumerate(zip(raw_dims, pad_dims)):
        w = jnp.zeros((pin, pout), jnp.float32)
        w = w.at[:rin, :rout].set(params[f"w{i + 1}"]).astype(jnp.bfloat16)
        b = jnp.zeros((1, pout), jnp.float32)
        b = b.at[:, :rout].set(params[f"b{i + 1}"])
        prepared[f"w{i + 1}"] = w
        prepared[f"b{i + 1}"] = b
    return prepared


def reference_forward(x, prepared):
    """Pure-JAX reference mirroring the kernel's dtype flow
    (bf16 matmul operands, f32 accumulation, f32 bias/ReLU)."""
    B, in_size = x.shape
    IN_PAD = prepared["w1"].shape[0]
    h = jnp.zeros((B, IN_PAD), jnp.float32).at[:, :in_size].set(x)
    h = jnp.dot(h.astype(jnp.bfloat16), prepared["w1"],
                preferred_element_type=jnp.float32)
    h = jnp.maximum(h + prepared["b1"], 0.0)
    h = jnp.dot(h.astype(jnp.bfloat16), prepared["w2"],
                preferred_element_type=jnp.float32)
    h = jnp.maximum(h + prepared["b2"], 0.0)
    h = jnp.dot(h.astype(jnp.bfloat16), prepared["w3"],
                preferred_element_type=jnp.float32)
    h = jnp.maximum(h + prepared["b3"], 0.0)
    out = jnp.dot(h.astype(jnp.bfloat16), prepared["w4"],
                  preferred_element_type=jnp.float32) + prepared["b4"]
    return out[:, :prepared["out_size"]]


def reference_forward_f32(x, params):
    """Full-precision reference with the original (unpadded) f32 weights."""
    h = jnp.maximum(x @ params["w1"] + params["b1"], 0.0)
    h = jnp.maximum(h @ params["w2"] + params["b2"], 0.0)
    h = jnp.maximum(h @ params["w3"] + params["b3"], 0.0)
    return h @ params["w4"] + params["b4"]


if __name__ == "__main__":
    key = jax.random.PRNGKey(0)
    k_param, k_x = jax.random.split(key)

    batch = 8
    input_size = 32
    output_size = 6

    params = init_params(k_param, input_size, output_size)
    prepared = prepare_params(params, input_size, output_size)
    x = jax.random.normal(k_x, (batch, input_size), dtype=jnp.float32)

    out = red_arquitectura_b_forward(x, prepared)
    out = jax.block_until_ready(out)

    assert out.shape == (batch, output_size), out.shape

    # Match the kernel's own dtype flow tightly ...
    ref = reference_forward(x, prepared)
    assert jnp.allclose(out, ref, atol=1e-2, rtol=1e-2), \
        float(jnp.max(jnp.abs(out - ref)))
    # ... and the original full-f32 module semantics loosely (bf16 weights).
    ref_f32 = reference_forward_f32(x, params)
    assert jnp.allclose(out, ref_f32, atol=1e-1, rtol=1e-1), \
        float(jnp.max(jnp.abs(out - ref_f32)))

    print("KERNEL_OK")
</pallas_src>

<mosaic_0001>
module attributes {stable_mosaic.version = 11 : i64} {
  func.func @_mlp_kernel(%arg0: i32, %arg1: memref<16x128xbf16, #tpu.memory_space<vmem>>, %arg2: memref<128x512xbf16, #tpu.memory_space<vmem>>, %arg3: memref<1x512xf32, #tpu.memory_space<vmem>>, %arg4: memref<512x512xbf16, #tpu.memory_space<vmem>>, %arg5: memref<1x512xf32, #tpu.memory_space<vmem>>, %arg6: memref<512x256xbf16, #tpu.memory_space<vmem>>, %arg7: memref<1x256xf32, #tpu.memory_space<vmem>>, %arg8: memref<256x128xbf16, #tpu.memory_space<vmem>>, %arg9: memref<1x128xf32, #tpu.memory_space<vmem>>, %arg10: memref<16x128xf32, #tpu.memory_space<vmem>>) attributes {dimension_semantics = [#tpu.dimension_semantics<parallel>], iteration_bounds = array<i64: 1>, scalar_prefetch = 0 : i64, scratch_operands = 0 : i64, tpu.core_type = #tpu.core_type<tc>, window_params = [{transform_indices = @transform_0, window_bounds = array<i64: 16, 128>}, {pipeline_mode = #tpu.pipeline_mode<synchronous>, transform_indices = @transform_1, window_bounds = array<i64: 128, 512>}, {pipeline_mode = #tpu.pipeline_mode<synchronous>, transform_indices = @transform_2, window_bounds = array<i64: 1, 512>}, {pipeline_mode = #tpu.pipeline_mode<synchronous>, transform_indices = @transform_3, window_bounds = array<i64: 512, 512>}, {pipeline_mode = #tpu.pipeline_mode<synchronous>, transform_indices = @transform_4, window_bounds = array<i64: 1, 512>}, {pipeline_mode = #tpu.pipeline_mode<synchronous>, transform_indices = @transform_5, window_bounds = array<i64: 512, 256>}, {pipeline_mode = #tpu.pipeline_mode<synchronous>, transform_indices = @transform_6, window_bounds = array<i64: 1, 256>}, {pipeline_mode = #tpu.pipeline_mode<synchronous>, transform_indices = @transform_7, window_bounds = array<i64: 256, 128>}, {pipeline_mode = #tpu.pipeline_mode<synchronous>, transform_indices = @transform_8, window_bounds = array<i64: 1, 128>}, {transform_indices = @transform_9, window_bounds = array<i64: 16, 128>}]} {
    %c0 = arith.constant 0 : index
    %c0_0 = arith.constant 0 : index
    %0 = vector.load %arg1[%c0, %c0_0] : memref<16x128xbf16, #tpu.memory_space<vmem>>, vector<16x128xbf16>
    %c0_1 = arith.constant 0 : index
    %c0_2 = arith.constant 0 : index
    %1 = vector.load %arg2[%c0_1, %c0_2] : memref<128x512xbf16, #tpu.memory_space<vmem>>, vector<128x512xbf16>
    %cst = arith.constant dense<0.000000e+00> : vector<16x512xf32>
    %2 = tpu.matmul %0, %1, %cst {dimension_numbers = #tpu.dot_dimension_numbers<[1], [0], [0], [1], [0, 0, 1, 1], [], []>} : vector<16x128xbf16>, vector<128x512xbf16>, vector<16x512xf32> -> vector<16x512xf32>
    %c0_3 = arith.constant 0 : index
    %c0_4 = arith.constant 0 : index
    %3 = vector.load %arg3[%c0_3, %c0_4] : memref<1x512xf32, #tpu.memory_space<vmem>>, vector<1x512xf32>
    %4 = vector.broadcast %3 : vector<1x512xf32> to vector<16x512xf32>
    %5 = arith.addf %2, %4 : vector<16x512xf32>
    %cst_5 = arith.constant 0.000000e+00 : f32
    %6 = vector.broadcast %cst_5 : f32 to vector<16x512xf32>
    %7 = arith.maximumf %5, %6 : vector<16x512xf32>
    %8 = arith.truncf %7 : vector<16x512xf32> to vector<16x512xbf16>
    %c0_6 = arith.constant 0 : index
    %c0_7 = arith.constant 0 : index
    %9 = vector.load %arg4[%c0_6, %c0_7] : memref<512x512xbf16, #tpu.memory_space<vmem>>, vector<512x512xbf16>
    %cst_8 = arith.constant dense<0.000000e+00> : vector<16x512xf32>
    %10 = tpu.matmul %8, %9, %cst_8 {dimension_numbers = #tpu.dot_dimension_numbers<[1], [0], [0], [1], [0, 0, 1, 1], [], []>} : vector<16x512xbf16>, vector<512x512xbf16>, vector<16x512xf32> -> vector<16x512xf32>
    %c0_9 = arith.constant 0 : index
    %c0_10 = arith.constant 0 : index
    %11 = vector.load %arg5[%c0_9, %c0_10] : memref<1x512xf32, #tpu.memory_space<vmem>>, vector<1x512xf32>
    %12 = vector.broadcast %11 : vector<1x512xf32> to vector<16x512xf32>
    %13 = arith.addf %10, %12 : vector<16x512xf32>
    %cst_11 = arith.constant 0.000000e+00 : f32
    %14 = vector.broadcast %cst_11 : f32 to vector<16x512xf32>
    %15 = arith.maximumf %13, %14 : vector<16x512xf32>
    %16 = arith.truncf %15 : vector<16x512xf32> to vector<16x512xbf16>
    %c0_12 = arith.constant 0 : index
    %c0_13 = arith.constant 0 : index
    %17 = vector.load %arg6[%c0_12, %c0_13] : memref<512x256xbf16, #tpu.memory_space<vmem>>, vector<512x256xbf16>
    %cst_14 = arith.constant dense<0.000000e+00> : vector<16x256xf32>
    %18 = tpu.matmul %16, %17, %cst_14 {dimension_numbers = #tpu.dot_dimension_numbers<[1], [0], [0], [1], [0, 0, 1, 1], [], []>} : vector<16x512xbf16>, vector<512x256xbf16>, vector<16x256xf32> -> vector<16x256xf32>
    %c0_15 = arith.constant 0 : index
    %c0_16 = arith.constant 0 : index
    %19 = vector.load %arg7[%c0_15, %c0_16] : memref<1x256xf32, #tpu.memory_space<vmem>>, vector<1x256xf32>
    %20 = vector.broadcast %19 : vector<1x256xf32> to vector<16x256xf32>
    %21 = arith.addf %18, %20 : vector<16x256xf32>
    %cst_17 = arith.constant 0.000000e+00 : f32
    %22 = vector.broadcast %cst_17 : f32 to vector<16x256xf32>
    %23 = arith.maximumf %21, %22 : vector<16x256xf32>
    %24 = arith.truncf %23 : vector<16x256xf32> to vector<16x256xbf16>
    %c0_18 = arith.constant 0 : index
    %c0_19 = arith.constant 0 : index
    %25 = vector.load %arg8[%c0_18, %c0_19] : memref<256x128xbf16, #tpu.memory_space<vmem>>, vector<256x128xbf16>
    %cst_20 = arith.constant dense<0.000000e+00> : vector<16x128xf32>
    %26 = tpu.matmul %24, %25, %cst_20 {dimension_numbers = #tpu.dot_dimension_numbers<[1], [0], [0], [1], [0, 0, 1, 1], [], []>} : vector<16x256xbf16>, vector<256x128xbf16>, vector<16x128xf32> -> vector<16x128xf32>
    %c0_21 = arith.constant 0 : index
    %c0_22 = arith.constant 0 : index
    %27 = vector.load %arg9[%c0_21, %c0_22] : memref<1x128xf32, #tpu.memory_space<vmem>>, vector<1x128xf32>
    %28 = vector.broadcast %27 : vector<1x128xf32> to vector<16x128xf32>
    %29 = arith.addf %26, %28 : vector<16x128xf32>
    %c0_23 = arith.constant 0 : index
    %c0_24 = arith.constant 0 : index
    %30 = vector.load %arg10[%c0_23, %c0_24] : memref<16x128xf32, #tpu.memory_space<vmem>>, vector<16x128xf32>
    tpu.vector_store %arg10[%c0_23, %c0_24], %29 {strides = array<i32>} : memref<16x128xf32, #tpu.memory_space<vmem>>, vector<16x128xf32>,
    return
  }
  func.func @transform_0(%arg0: i32) -> (i32, i32) {
    %c0_i32 = arith.constant 0 : i32
    %c0_i32_0 = arith.constant 0 : i32
    return %arg0, %c0_i32 : i32, i32
  }
  func.func @transform_1(%arg0: i32) -> (i32, i32) {
    %c0_i32 = arith.constant 0 : i32
    %c0_i32_0 = arith.constant 0 : i32
    %c0_i32_1 = arith.constant 0 : i32
    return %c0_i32, %c0_i32_0 : i32, i32
  }
  func.func @transform_2(%arg0: i32) -> (i32, i32) {
    %c0_i32 = arith.constant 0 : i32
    %c0_i32_0 = arith.constant 0 : i32
    %c0_i32_1 = arith.constant 0 : i32
    return %c0_i32, %c0_i32_0 : i32, i32
  }
  func.func @transform_3(%arg0: i32) -> (i32, i32) {
    %c0_i32 = arith.constant 0 : i32
    %c0_i32_0 = arith.constant 0 : i32
    %c0_i32_1 = arith.constant 0 : i32
    return %c0_i32, %c0_i32_0 : i32, i32
  }
  func.func @transform_4(%arg0: i32) -> (i32, i32) {
    %c0_i32 = arith.constant 0 : i32
    %c0_i32_0 = arith.constant 0 : i32
    %c0_i32_1 = arith.constant 0 : i32
    return %c0_i32, %c0_i32_0 : i32, i32
  }
  func.func @transform_5(%arg0: i32) -> (i32, i32) {
    %c0_i32 = arith.constant 0 : i32
    %c0_i32_0 = arith.constant 0 : i32
    %c0_i32_1 = arith.constant 0 : i32
    return %c0_i32, %c0_i32_0 : i32, i32
  }
  func.func @transform_6(%arg0: i32) -> (i32, i32) {
    %c0_i32 = arith.constant 0 : i32
    %c0_i32_0 = arith.constant 0 : i32
    %c0_i32_1 = arith.constant 0 : i32
    return %c0_i32, %c0_i32_0 : i32, i32
  }
  func.func @transform_7(%arg0: i32) -> (i32, i32) {
    %c0_i32 = arith.constant 0 : i32
    %c0_i32_0 = arith.constant 0 : i32
    %c0_i32_1 = arith.constant 0 : i32
    return %c0_i32, %c0_i32_0 : i32, i32
  }
  func.func @transform_8(%arg0: i32) -> (i32, i32) {
    %c0_i32 = arith.constant 0 : i32
    %c0_i32_0 = arith.constant 0 : i32
    %c0_i32_1 = arith.constant 0 : i32
    return %c0_i32, %c0_i32_0 : i32, i32
  }
  func.func @transform_9(%arg0: i32) -> (i32, i32) {
    %c0_i32 = arith.constant 0 : i32
    %c0_i32_0 = arith.constant 0 : i32
    return %arg0, %c0_i32 : i32, i32
  }
}

</mosaic_0001>

<llo_original>
// kernel: tpu_custom_call.1
$region0: #{tpu_custom_call.1}
  #allocation0 [shape = 'u32[]', space=smem, size = 0x4, offset = 0x4, fixed_abs, tag = 'smem constant byte address 0x4 - core index']
  #allocation1 [shape = 'u32[144,128]{1,0:T(1,128)}', space=vmem, size = 0x12000, scoped, tag = 'internal scratch']
  %s0 = inlined_call_operand.hbm [shape: bf16[16,128], index: 0, kind: input, shape index: {}]
  %s1 = inlined_call_operand.hbm [shape: bf16[128,512], index: 1, kind: input, shape index: {}]
  %s2 = inlined_call_operand.vmem [shape: f32[1,512], index: 2, kind: input, shape index: {}]
  %s3 = inlined_call_operand.hbm [shape: bf16[512,512], index: 3, kind: input, shape index: {}]
  %s4 = inlined_call_operand.vmem [shape: f32[1,512], index: 4, kind: input, shape index: {}]
  %s5 = inlined_call_operand.hbm [shape: bf16[512,256], index: 5, kind: input, shape index: {}]
  %s6 = inlined_call_operand.vmem [shape: f32[1,256], index: 6, kind: input, shape index: {}]
  %s7 = inlined_call_operand.hbm [shape: bf16[256,128], index: 7, kind: input, shape index: {}]
  %s8 = inlined_call_operand.vmem [shape: f32[1,128], index: 8, kind: input, shape index: {}]
  %s9 = inlined_call_operand.hbm [shape: f32[16,128], index: 9, kind: output, shape index: {}]
  %s10 = sld [smem:[#allocation0]]
  $region66: #{tpu_custom_call.1} parent=0
    _
  %s12 = ssub.s32 1, %s10
  %s13 = scalar_select 0, %s12, %s10
  $region1: #{tpu_custom_call.1} parent=0
    #allocation2 [shape = 'u8[4096]{0}', space=vmem, size = 0x1000, scoped, tag = 'input window, operand 0, single buffered']
    #allocation3 [shape = 's32[1]{0}', space=sflag, size = 0x4, scoped, tag = 'scoped memory for tpu_custom_call.1']
    #allocation4 [shape = 's32[1]{0}', space=sflag, size = 0x4, scoped, tag = 'scoped memory for tpu_custom_call.1']
    #allocation5 [shape = 'u8[131072]{0}', space=vmem, size = 0x20000, scoped, tag = 'input window, operand 1, single buffered']
    #allocation6 [shape = 's32[1]{0}', space=sflag, size = 0x4, scoped, tag = 'scoped memory for tpu_custom_call.1']
    #allocation7 [shape = 'u8[524288]{0}', space=vmem, size = 0x80000, scoped, tag = 'input window, operand 3, single buffered']
    #allocation8 [shape = 'u8[262144]{0}', space=vmem, size = 0x40000, scoped, tag = 'input window, operand 5, single buffered']
    #allocation9 [shape = 's32[1]{0}', space=sflag, size = 0x4, scoped, tag = 'scoped memory for tpu_custom_call.1']
    #allocation10 [shape = 'u8[65536]{0}', space=vmem, size = 0x10000, scoped, tag = 'input window, operand 7, single buffered']
    #allocation11 [shape = 'u8[8192]{0}', space=vmem, size = 0x2000, scoped, tag = 'output window, operand 0, single buffered']
    %14 = vsyncpa [#allocation3], 0
    %15 = vsyncpa [#allocation6], 0
    %16 = vsyncpa [#allocation9], 0
    %17 = vsyncpa [#allocation4], 0
    // Predicated region
    $region2: #{tpu_custom_call.1} parent=1 // pred_check
      _
    $region3: #{tpu_custom_call.1} parent=1 // pred_check_branch
      %19 = sbr.rel (0) target = $region5
    $region4: #{tpu_custom_call.1} parent=1 // pred_region
      %s21 = ssub.s32 128, 128
      %22 = vsyncadd [#allocation3], %s21
      %s23 = sshll.u32 [#allocation2], 4
      %s24 = int_to_ptr.vmem [resolvable:$true] %s23
      %29 = dma.hbm_to_vmem [thread:$0]  %s0, 128, %s24, [#allocation3], 64, 64, 4
    $region5: #{tpu_custom_call.1} parent=1 // pred_fallthru
      _
    // Predicated region
    $region6: #{tpu_custom_call.1} parent=1 // pred_check
      _
    $region7: #{tpu_custom_call.1} parent=1 // pred_check_branch
      %31 = sbr.rel (0) target = $region9
    $region8: #{tpu_custom_call.1} parent=1 // pred_region
      %s33 = ssub.s32 4096, 4096
      %34 = vsyncadd [#allocation6], %s33
      %s35 = sshll.u32 [#allocation5], 4
      %s36 = int_to_ptr.vmem [resolvable:$true] %s35
      %41 = dma.hbm_to_vmem [thread:$0]  %s1, 4096, %s36, [#allocation6], 256, 256, 16
    $region9: #{tpu_custom_call.1} parent=1 // pred_fallthru
      _
    // Predicated region
    $region10: #{tpu_custom_call.1} parent=1 // pred_check
      _
    $region11: #{tpu_custom_call.1} parent=1 // pred_check_branch
      %43 = sbr.rel (0) target = $region13
    $region12: #{tpu_custom_call.1} parent=1 // pred_region
      _
    $region13: #{tpu_custom_call.1} parent=1 // pred_fallthru
      _
    // Predicated region
    $region14: #{tpu_custom_call.1} parent=1 // pred_check
      _
    $region15: #{tpu_custom_call.1} parent=1 // pred_check_branch
      %45 = sbr.rel (0) target = $region17
    $region16: #{tpu_custom_call.1} parent=1 // pred_region
      %s47 = ssub.s32 16384, 16384
      %48 = vsyncadd [#allocation6], %s47
      %s49 = sshll.u32 [#allocation7], 4
      %s50 = int_to_ptr.vmem [resolvable:$true] %s49
      %55 = dma.hbm_to_vmem [thread:$0]  %s3, 16384, %s50, [#allocation6], 256, 256, 16
    $region17: #{tpu_custom_call.1} parent=1 // pred_fallthru
      _
    // Predicated region
    $region18: #{tpu_custom_call.1} parent=1 // pred_check
      _
    $region19: #{tpu_custom_call.1} parent=1 // pred_check_branch
      %57 = sbr.rel (0) target = $region21
    $region20: #{tpu_custom_call.1} parent=1 // pred_region
      _
    $region21: #{tpu_custom_call.1} parent=1 // pred_fallthru
      _
    // Predicated region
    $region22: #{tpu_custom_call.1} parent=1 // pred_check
      _
    $region23: #{tpu_custom_call.1} parent=1 // pred_check_branch
      %59 = sbr.rel (0) target = $region25
    $region24: #{tpu_custom_call.1} parent=1 // pred_region
      %s61 = ssub.s32 8192, 8192
      %62 = vsyncadd [#allocation9], %s61
      %s63 = sshll.u32 [#allocation8], 4
      %s64 = int_to_ptr.vmem [resolvable:$true] %s63
      %69 = dma.hbm_to_vmem [thread:$0]  %s5, 8192, %s64, [#allocation9], 128, 128, 8
    $region25: #{tpu_custom_call.1} parent=1 // pred_fallthru
      _
    // Predicated region
    $region26: #{tpu_custom_call.1} parent=1 // pred_check
      _
    $region27: #{tpu_custom_call.1} parent=1 // pred_check_branch
      %71 = sbr.rel (0) target = $region29
    $region28: #{tpu_custom_call.1} parent=1 // pred_region
      _
    $region29: #{tpu_custom_call.1} parent=1 // pred_fallthru
      _
    // Predicated region
    $region30: #{tpu_custom_call.1} parent=1 // pred_check
      _
    $region31: #{tpu_custom_call.1} parent=1 // pred_check_branch
      %73 = sbr.rel (0) target = $region33
    $region32: #{tpu_custom_call.1} parent=1 // pred_region
      %s75 = ssub.s32 2048, 2048
      %76 = vsyncadd [#allocation9], %s75
      %s77 = sshll.u32 [#allocation10], 4
      %s78 = int_to_ptr.vmem [resolvable:$true] %s77
      %83 = dma.hbm_to_vmem [thread:$0]  %s7, 2048, %s78, [#allocation9], 64, 64, 4
    $region33: #{tpu_custom_call.1} parent=1 // pred_fallthru
      _
    // Predicated region
    $region34: #{tpu_custom_call.1} parent=1 // pred_check
      _
    $region35: #{tpu_custom_call.1} parent=1 // pred_check_branch
      %85 = sbr.rel (0) target = $region37
    $region36: #{tpu_custom_call.1} parent=1 // pred_region
      _
    $region37: #{tpu_custom_call.1} parent=1 // pred_fallthru
      _
    // Predicated region
    $region38: #{tpu_custom_call.1} parent=1 // pred_check
      _
    $region39: #{tpu_custom_call.1} parent=1 // pred_check_branch
      %87 = sbr.rel (0) target = $region41
    $region40: #{tpu_custom_call.1} parent=1 // pred_region
      %88 = dma.done [#allocation3], 128
    $region41: #{tpu_custom_call.1} parent=1 // pred_fallthru
      _
    // Predicated region
    $region42: #{tpu_custom_call.1} parent=1 // pred_check
      _
    $region43: #{tpu_custom_call.1} parent=1 // pred_check_branch
      %90 = sbr.rel (0) target = $region45
    $region44: #{tpu_custom_call.1} parent=1 // pred_region
      %91 = dma.done [#allocation6], 4096
    $region45: #{tpu_custom_call.1} parent=1 // pred_fallthru
      _
    // Predicated region
    $region46: #{tpu_custom_call.1} parent=1 // pred_check
      _
    $region47: #{tpu_custom_call.1} parent=1 // pred_check_branch
      %93 = sbr.rel (0) target = $region49
    $region48: #{tpu_custom_call.1} parent=1 // pred_region
      %94 = dma.done [#allocation6], 16384
    $region49: #{tpu_custom_call.1} parent=1 // pred_fallthru
      _
    // Predicated region
    $region50: #{tpu_custom_call.1} parent=1 // pred_check
      _
    $region51: #{tpu_custom_call.1} parent=1 // pred_check_branch
      %96 = sbr.rel (0) target = $region53
    $region52: #{tpu_custom_call.1} parent=1 // pred_region
      %97 = dma.done [#allocation9], 8192
    $region53: #{tpu_custom_call.1} parent=1 // pred_fallthru
      _
    // Predicated region
    $region54: #{tpu_custom_call.1} parent=1 // pred_check
      _
    $region55: #{tpu_custom_call.1} parent=1 // pred_check_branch
      %99 = sbr.rel (0) target = $region57
    $region56: #{tpu_custom_call.1} parent=1 // pred_region
      %100 = dma.done [#allocation9], 2048
    $region57: #{tpu_custom_call.1} parent=1 // pred_fallthru
      _
    %v102 = vld [vmem:[#allocation2] sm:$0xf]
    %v103 = vld [vmem:[#allocation2 + $0x4] sm:$0xf]
    %v104 = vld [vmem:[#allocation5] sm:$0xff]
    %v105 = vld [vmem:[#allocation5 + $0x8] sm:$0xff]
    %v106 = vld [vmem:[#allocation5 + $0x10] sm:$0xff]
    %v107 = vld [vmem:[#allocation5 + $0x18] sm:$0xff]
    %v108 = vld [vmem:[#allocation5 + $0x20] sm:$0xff]
    %v109 = vld [vmem:[#allocation5 + $0x28] sm:$0xff]
    %v110 = vld [vmem:[#allocation5 + $0x30] sm:$0xff]
    %v111 = vld [vmem:[#allocation5 + $0x38] sm:$0xff]
    %v112 = vld [vmem:[#allocation5 + $0x40] sm:$0xff]
    %v113 = vld [vmem:[#allocation5 + $0x48] sm:$0xff]
    %v114 = vld [vmem:[#allocation5 + $0x50] sm:$0xff]
    %v115 = vld [vmem:[#allocation5 + $0x58] sm:$0xff]
    %v116 = vld [vmem:[#allocation5 + $0x60] sm:$0xff]
    %v117 = vld [vmem:[#allocation5 + $0x68] sm:$0xff]
    %v118 = vld [vmem:[#allocation5 + $0x70] sm:$0xff]
    %v119 = vld [vmem:[#allocation5 + $0x78] sm:$0xff]
    %v120 = vld [vmem:[#allocation5 + $0x80] sm:$0xff]
    %v121 = vld [vmem:[#allocation5 + $0x88] sm:$0xff]
    %v122 = vld [vmem:[#allocation5 + $0x90] sm:$0xff]
    %v123 = vld [vmem:[#allocation5 + $0x98] sm:$0xff]
    %v124 = vld [vmem:[#allocation5 + $0xa0] sm:$0xff]
    %v125 = vld [vmem:[#allocation5 + $0xa8] sm:$0xff]
    %v126 = vld [vmem:[#allocation5 + $0xb0] sm:$0xff]
    %v127 = vld [vmem:[#allocation5 + $0xb8] sm:$0xff]
    %v128 = vld [vmem:[#allocation5 + $0xc0] sm:$0xff]
    %v129 = vld [vmem:[#allocation5 + $0xc8] sm:$0xff]
    %v130 = vld [vmem:[#allocation5 + $0xd0] sm:$0xff]
    %v131 = vld [vmem:[#allocation5 + $0xd8] sm:$0xff]
    %v132 = vld [vmem:[#allocation5 + $0xe0] sm:$0xff]
    %v133 = vld [vmem:[#allocation5 + $0xe8] sm:$0xff]
    %v134 = vld [vmem:[#allocation5 + $0xf0] sm:$0xff]
    %v135 = vld [vmem:[#allocation5 + $0xf8] sm:$0xff]
    %v136 = vld [vmem:[%s2] sm:$0xf]
    %v138 = vlaneseq
    %v139 = vshrl.u32 %v138, 7
    %v140 = vsub.s32 0, %v139
    %v141 = vrot.slane %v136, %v140
    %v142 = vlaneseq
    %v143 = vshrl.u32 %v142, 7
    %v144 = vsub.s32 1, %v143
    %v145 = vrot.slane %v136, %v144
    %v146 = vlaneseq
    %v147 = vshrl.u32 %v146, 7
    %v148 = vsub.s32 2, %v147
    %v149 = vrot.slane %v136, %v148
    %v150 = vlaneseq
    %v151 = vshrl.u32 %v150, 7
    %v152 = vsub.s32 3, %v151
    %v153 = vrot.slane %v136, %v152
    %v160 = vunpack.c.l.b16 %v102
    %v161 = vunpack.c.l.b16 %v103
    %v162 = vpack.c.b16 %v161, %v160
    %v196 = vunpack.c.l.b16 %v104
    %v197 = vunpack.c.h.b16 %v104
    %v198 = vunpack.c.l.b16 %v105
    %v199 = vunpack.c.h.b16 %v105
    %v200 = vunpack.c.l.b16 %v106
    %v201 = vunpack.c.h.b16 %v106
    %v202 = vunpack.c.l.b16 %v107
    %v203 = vunpack.c.h.b16 %v107
    %v204 = vunpack.c.l.b16 %v108
    %v205 = vunpack.c.h.b16 %v108
    %v206 = vunpack.c.l.b16 %v109
    %v207 = vunpack.c.h.b16 %v109
    %v208 = vunpack.c.l.b16 %v110
    %v209 = vunpack.c.h.b16 %v110
    %v210 = vunpack.c.l.b16 %v111
    %v211 = vunpack.c.h.b16 %v111
    %v212 = vunpack.c.l.b16 %v112
    %v213 = vunpack.c.h.b16 %v112
    %v214 = vunpack.c.l.b16 %v113
    %v215 = vunpack.c.h.b16 %v113
    %v216 = vunpack.c.l.b16 %v114
    %v217 = vunpack.c.h.b16 %v114
    %v218 = vunpack.c.l.b16 %v115
    %v219 = vunpack.c.h.b16 %v115
    %v220 = vunpack.c.l.b16 %v116
    %v221 = vunpack.c.h.b16 %v116
    %v222 = vunpack.c.l.b16 %v117
    %v223 = vunpack.c.h.b16 %v117
    %v224 = vunpack.c.l.b16 %v118
    %v225 = vunpack.c.h.b16 %v118
    %v226 = vunpack.c.l.b16 %v119
    %v227 = vunpack.c.h.b16 %v119
    %v228 = vunpack.c.l.b16 %v120
    %v229 = vunpack.c.h.b16 %v120
    %v230 = vunpack.c.l.b16 %v121
    %v231 = vunpack.c.h.b16 %v121
    %v232 = vunpack.c.l.b16 %v122
    %v233 = vunpack.c.h.b16 %v122
    %v234 = vunpack.c.l.b16 %v123
    %v235 = vunpack.c.h.b16 %v123
    %v236 = vunpack.c.l.b16 %v124
    %v237 = vunpack.c.h.b16 %v124
    %v238 = vunpack.c.l.b16 %v125
    %v239 = vunpack.c.h.b16 %v125
    %v240 = vunpack.c.l.b16 %v126
    %v241 = vunpack.c.h.b16 %v126
    %v242 = vunpack.c.l.b16 %v127
    %v243 = vunpack.c.h.b16 %v127
    %v244 = vunpack.c.l.b16 %v128
    %v245 = vunpack.c.h.b16 %v128
    %v246 = vunpack.c.l.b16 %v129
    %v247 = vunpack.c.h.b16 %v129
    %v248 = vunpack.c.l.b16 %v130
    %v249 = vunpack.c.h.b16 %v130
    %v250 = vunpack.c.l.b16 %v131
    %v251 = vunpack.c.h.b16 %v131
    %v252 = vunpack.c.l.b16 %v132
    %v253 = vunpack.c.h.b16 %v132
    %v254 = vunpack.c.l.b16 %v133
    %v255 = vunpack.c.h.b16 %v133
    %v256 = vunpack.c.l.b16 %v134
    %v257 = vunpack.c.h.b16 %v134
    %v258 = vunpack.c.l.b16 %v135
    %v259 = vunpack.c.h.b16 %v135
    %v260 = vpack.c.b16 %v200, %v196
    %v261 = vpack.c.b16 %v201, %v197
    %v262 = vpack.c.b16 %v202, %v198
    %v263 = vpack.c.b16 %v203, %v199
    %v264 = vpack.c.b16 %v208, %v204
    %v265 = vpack.c.b16 %v209, %v205
    %v266 = vpack.c.b16 %v210, %v206
    %v267 = vpack.c.b16 %v211, %v207
    %v268 = vpack.c.b16 %v216, %v212
    %v269 = vpack.c.b16 %v217, %v213
    %v270 = vpack.c.b16 %v218, %v214
    %v271 = vpack.c.b16 %v219, %v215
    %v272 = vpack.c.b16 %v224, %v220
    %v273 = vpack.c.b16 %v225, %v221
    %v274 = vpack.c.b16 %v226, %v222
    %v275 = vpack.c.b16 %v227, %v223
    %v276 = vpack.c.b16 %v232, %v228
    %v277 = vpack.c.b16 %v233, %v229
    %v278 = vpack.c.b16 %v234, %v230
    %v279 = vpack.c.b16 %v235, %v231
    %v280 = vpack.c.b16 %v240, %v236
    %v281 = vpack.c.b16 %v241, %v237
    %v282 = vpack.c.b16 %v242, %v238
    %v283 = vpack.c.b16 %v243, %v239
    %v284 = vpack.c.b16 %v248, %v244
    %v285 = vpack.c.b16 %v249, %v245
    %v286 = vpack.c.b16 %v250, %v246
    %v287 = vpack.c.b16 %v251, %v247
    %v288 = vpack.c.b16 %v256, %v252
    %v289 = vpack.c.b16 %v257, %v253
    %v290 = vpack.c.b16 %v258, %v254
    %v291 = vpack.c.b16 %v259, %v255
    %324 = vmatprep.subr.bf16.mxu0 %v261
    %325 = vmatpush1.bf16.msra.mxu0 %v260
    %326 = vmatprep.subr.bf16.mxu0 %v265
    %327 = vmatpush1.bf16.msra.mxu0 %v264
    %328 = vmatprep.subr.bf16.mxu0 %v269
    %329 = vmatpush1.bf16.msra.mxu0 %v268
    %330 = vmatprep.subr.bf16.mxu0 %v273
    %331 = vmatpush1.bf16.msra.mxu0 %v272
    %332 = vmatprep.subr.bf16.mxu0 %v277
    %333 = vmatpush1.bf16.msra.mxu0 %v276
    %334 = vmatprep.subr.bf16.mxu0 %v281
    %335 = vmatpush1.bf16.msra.mxu0 %v280
    %336 = vmatprep.subr.bf16.mxu0 %v285
    %337 = vmatpush1.bf16.msra.mxu0 %v284
    %338 = vmatprep.subr.bf16.mxu0 %v289
    %339 = vmatpush1.bf16.msra.mxu0 %v288
    %340 = vmatprep.subr.bf16.mxu0 0
    %341 = vmatpush1.bf16.msra.mxu0 0
    %342 = vmatprep.subr.bf16.mxu0 0
    %343 = vmatpush1.bf16.msra.mxu0 0
    %344 = vmatprep.subr.bf16.mxu0 0
    %345 = vmatpush1.bf16.msra.mxu0 0
    %346 = vmatprep.subr.bf16.mxu0 0
    %347 = vmatpush1.bf16.msra.mxu0 0
    %348 = vmatprep.subr.bf16.mxu0 0
    %349 = vmatpush1.bf16.msra.mxu0 0
    %350 = vmatprep.subr.bf16.mxu0 0
    %351 = vmatpush1.bf16.msra.mxu0 0
    %352 = vmatprep.subr.bf16.mxu0 0
    %353 = vmatpush1.bf16.msra.mxu0 0
    %354 = vmatprep.subr.bf16.mxu0 0
    %355 = vmatpush1.bf16.msra.mxu0 0
    %356 = vmatprep.mubr.bf16.mxu0 0
    %357 = vmatmul.mubr.bf16.gmra.mrb[0].mxu0 %v162
    %v358 = vpop.f32.mrb[0].mxu0
    %v359 = vadd.f32 %v141, %v358
    %v360 = vpop.f32.mrb[0].mxu0
    %v361 = vadd.f32 %v145, %v360
    %v362 = vpop.f32.mrb[0].mxu0
    %v363 = vadd.f32 %v141, %v362
    %v364 = vpop.f32.mrb[0].mxu0
    %v365 = vadd.f32 %v145, %v364
    %366 = vdwg.mxu0
    %367 = vmatprep.subr.bf16.mxu0 %v263
    %368 = vmatpush1.bf16.msra.mxu0 %v262
    %369 = vmatprep.subr.bf16.mxu0 %v267
    %370 = vmatpush1.bf16.msra.mxu0 %v266
    %371 = vmatprep.subr.bf16.mxu0 %v271
    %372 = vmatpush1.bf16.msra.mxu0 %v270
    %373 = vmatprep.subr.bf16.mxu0 %v275
    %374 = vmatpush1.bf16.msra.mxu0 %v274
    %375 = vmatprep.subr.bf16.mxu0 %v279
    %376 = vmatpush1.bf16.msra.mxu0 %v278
    %377 = vmatprep.subr.bf16.mxu0 %v283
    %378 = vmatpush1.bf16.msra.mxu0 %v282
    %379 = vmatprep.subr.bf16.mxu0 %v287
    %380 = vmatpush1.bf16.msra.mxu0 %v286
    %381 = vmatprep.subr.bf16.mxu0 %v291
    %382 = vmatpush1.bf16.msra.mxu0 %v290
    %383 = vmatprep.subr.bf16.mxu0 0
    %384 = vmatpush1.bf16.msra.mxu0 0
    %385 = vmatprep.subr.bf16.mxu0 0
    %386 = vmatpush1.bf16.msra.mxu0 0
    %387 = vmatprep.subr.bf16.mxu0 0
    %388 = vmatpush1.bf16.msra.mxu0 0
    %389 = vmatprep.subr.bf16.mxu0 0
    %390 = vmatpush1.bf16.msra.mxu0 0
    %391 = vmatprep.subr.bf16.mxu0 0
    %392 = vmatpush1.bf16.msra.mxu0 0
    %393 = vmatprep.subr.bf16.mxu0 0
    %394 = vmatpush1.bf16.msra.mxu0 0
    %395 = vmatprep.subr.bf16.mxu0 0
    %396 = vmatpush1.bf16.msra.mxu0 0
    %397 = vmatprep.subr.bf16.mxu0 0
    %398 = vmatpush1.bf16.msra.mxu0 0
    %399 = vmatprep.mubr.bf16.mxu0 0
    %400 = vmatmul.mubr.bf16.gmra.mrb[0].mxu0 %v162
    %v401 = vpop.f32.mrb[0].mxu0
    %v402 = vadd.f32 %v149, %v401
    %v403 = vpop.f32.mrb[0].mxu0
    %v404 = vadd.f32 %v153, %v403
    %v405 = vpop.f32.mrb[0].mxu0
    %v406 = vadd.f32 %v149, %v405
    %v407 = vpop.f32.mrb[0].mxu0
    %v408 = vadd.f32 %v153, %v407
    %409 = vdwg.mxu0
    %v410 = vmax.f32 %v359, 0.0
    %v411 = vmax.f32 %v361, 0.0
    %v412 = vmax.f32 %v402, 0.0
    %v413 = vmax.f32 %v404, 0.0
    %v414 = vmax.f32 %v363, 0.0
    %v415 = vmax.f32 %v365, 0.0
    %v416 = vmax.f32 %v406, 0.0
    %v417 = vmax.f32 %v408, 0.0
    %v418 = vpack.c.bf16 %v414, %v410
    %v419 = vpack.c.bf16 %v415, %v411
    %v420 = vpack.c.bf16 %v416, %v412
    %v421 = vpack.c.bf16 %v417, %v413
    %v422 = vld [vmem:[#allocation7] sm:$0xff]
    %v423 = vld [vmem:[#allocation7 + $0x8] sm:$0xff]
    %v424 = vld [vmem:[#allocation7 + $0x10] sm:$0xff]
    %v425 = vld [vmem:[#allocation7 + $0x18] sm:$0xff]
    %v426 = vld [vmem:[#allocation7 + $0x20] sm:$0xff]
    %v427 = vld [vmem:[#allocation7 + $0x28] sm:$0xff]
    %v428 = vld [vmem:[#allocation7 + $0x30] sm:$0xff]
    %v429 = vld [vmem:[#allocation7 + $0x38] sm:$0xff]
    %v430 = vld [vmem:[#allocation7 + $0x40] sm:$0xff]
    %v431 = vld [vmem:[#allocation7 + $0x48] sm:$0xff]
    %v432 = vld [vmem:[#allocation7 + $0x50] sm:$0xff]
    %v433 = vld [vmem:[#allocation7 + $0x58] sm:$0xff]
    %v434 = vld [vmem:[#allocation7 + $0x60] sm:$0xff]
    %v435 = vld [vmem:[#allocation7 + $0x68] sm:$0xff]
    %v436 = vld [vmem:[#allocation7 + $0x70] sm:$0xff]
    %v437 = vld [vmem:[#allocation7 + $0x78] sm:$0xff]
    %v438 = vld [vmem:[#allocation7 + $0x80] sm:$0xff]
    %v439 = vld [vmem:[#allocation7 + $0x88] sm:$0xff]
    %v440 = vld [vmem:[#allocation7 + $0x90] sm:$0xff]
    %v441 = vld [vmem:[#allocation7 + $0x98] sm:$0xff]
    %v442 = vld [vmem:[#allocation7 + $0xa0] sm:$0xff]
    %v443 = vld [vmem:[#allocation7 + $0xa8] sm:$0xff]
    %v444 = vld [vmem:[#allocation7 + $0xb0] sm:$0xff]
    %v445 = vld [vmem:[#allocation7 + $0xb8] sm:$0xff]
    %v446 = vld [vmem:[#allocation7 + $0xc0] sm:$0xff]
    %v447 = vld [vmem:[#allocation7 + $0xc8] sm:$0xff]
    %v448 = vld [vmem:[#allocation7 + $0xd0] sm:$0xff]
    %v449 = vld [vmem:[#allocation7 + $0xd8] sm:$0xff]
    %v450 = vld [vmem:[#allocation7 + $0xe0] sm:$0xff]
    %v451 = vld [vmem:[#allocation7 + $0xe8] sm:$0xff]
    %v452 = vld [vmem:[#allocation7 + $0xf0] sm:$0xff]
    %v453 = vld [vmem:[#allocation7 + $0xf8] sm:$0xff]
    %v454 = vld [vmem:[#allocation7 + $0x100] sm:$0xff]
    %v455 = vld [vmem:[#allocation7 + $0x108] sm:$0xff]
    %v456 = vld [vmem:[#allocation7 + $0x110] sm:$0xff]
    %v457 = vld [vmem:[#allocation7 + $0x118] sm:$0xff]
    %v458 = vld [vmem:[#allocation7 + $0x120] sm:$0xff]
    %v459 = vld [vmem:[#allocation7 + $0x128] sm:$0xff]
    %v460 = vld [vmem:[#allocation7 + $0x130] sm:$0xff]
    %v461 = vld [vmem:[#allocation7 + $0x138] sm:$0xff]
    %v462 = vld [vmem:[#allocation7 + $0x140] sm:$0xff]
    %v463 = vld [vmem:[#allocation7 + $0x148] sm:$0xff]
    %v464 = vld [vmem:[#allocation7 + $0x150] sm:$0xff]
    %v465 = vld [vmem:[#allocation7 + $0x158] sm:$0xff]
    %v466 = vld [vmem:[#allocation7 + $0x160] sm:$0xff]
    %v467 = vld [vmem:[#allocation7 + $0x168] sm:$0xff]
    %v468 = vld [vmem:[#allocation7 + $0x170] sm:$0xff]
    %v469 = vld [vmem:[#allocation7 + $0x178] sm:$0xff]
    %v470 = vld [vmem:[#allocation7 + $0x180] sm:$0xff]
    %v471 = vld [vmem:[#allocation7 + $0x188] sm:$0xff]
    %v472 = vld [vmem:[#allocation7 + $0x190] sm:$0xff]
    %v473 = vld [vmem:[#allocation7 + $0x198] sm:$0xff]
    %v474 = vld [vmem:[#allocation7 + $0x1a0] sm:$0xff]
    %v475 = vld [vmem:[#allocation7 + $0x1a8] sm:$0xff]
    %v476 = vld [vmem:[#allocation7 + $0x1b0] sm:$0xff]
    %v477 = vld [vmem:[#allocation7 + $0x1b8] sm:$0xff]
    %v478 = vld [vmem:[#allocation7 + $0x1c0] sm:$0xff]
    %v479 = vld [vmem:[#allocation7 + $0x1c8] sm:$0xff]
    %v480 = vld [vmem:[#allocation7 + $0x1d0] sm:$0xff]
    %v481 = vld [vmem:[#allocation7 + $0x1d8] sm:$0xff]
    %v482 = vld [vmem:[#allocation7 + $0x1e0] sm:$0xff]
    %v483 = vld [vmem:[#allocation7 + $0x1e8] sm:$0xff]
    %v484 = vld [vmem:[#allocation7 + $0x1f0] sm:$0xff]
    %v485 = vld [vmem:[#allocation7 + $0x1f8] sm:$0xff]
    %v486 = vld [vmem:[#allocation7 + $0x200] sm:$0xff]
    %v487 = vld [vmem:[#allocation7 + $0x208] sm:$0xff]
    %v488 = vld [vmem:[#allocation7 + $0x210] sm:$0xff]
    %v489 = vld [vmem:[#allocation7 + $0x218] sm:$0xff]
    %v490 = vld [vmem:[#allocation7 + $0x220] sm:$0xff]
    %v491 = vld [vmem:[#allocation7 + $0x228] sm:$0xff]
    %v492 = vld [vmem:[#allocation7 + $0x230] sm:$0xff]
    %v493 = vld [vmem:[#allocation7 + $0x238] sm:$0xff]
    %v494 = vld [vmem:[#allocation7 + $0x240] sm:$0xff]
    %v495 = vld [vmem:[#allocation7 + $0x248] sm:$0xff]
    %v496 = vld [vmem:[#allocation7 + $0x250] sm:$0xff]
    %v497 = vld [vmem:[#allocation7 + $0x258] sm:$0xff]
    %v498 = vld [vmem:[#allocation7 + $0x260] sm:$0xff]
    %v499 = vld [vmem:[#allocation7 + $0x268] sm:$0xff]
    %v500 = vld [vmem:[#allocation7 + $0x270] sm:$0xff]
    %v501 = vld [vmem:[#allocation7 + $0x278] sm:$0xff]
    %v502 = vld [vmem:[#allocation7 + $0x280] sm:$0xff]
    %v503 = vld [vmem:[#allocation7 + $0x288] sm:$0xff]
    %v504 = vld [vmem:[#allocation7 + $0x290] sm:$0xff]
    %v505 = vld [vmem:[#allocation7 + $0x298] sm:$0xff]
    %v506 = vld [vmem:[#allocation7 + $0x2a0] sm:$0xff]
    %v507 = vld [vmem:[#allocation7 + $0x2a8] sm:$0xff]
    %v508 = vld [vmem:[#allocation7 + $0x2b0] sm:$0xff]
    %v509 = vld [vmem:[#allocation7 + $0x2b8] sm:$0xff]
    %v510 = vld [vmem:[#allocation7 + $0x2c0] sm:$0xff]
    %v511 = vld [vmem:[#allocation7 + $0x2c8] sm:$0xff]
    %v512 = vld [vmem:[#allocation7 + $0x2d0] sm:$0xff]
    %v513 = vld [vmem:[#allocation7 + $0x2d8] sm:$0xff]
    %v514 = vld [vmem:[#allocation7 + $0x2e0] sm:$0xff]
    %v515 = vld [vmem:[#allocation7 + $0x2e8] sm:$0xff]
    %v516 = vld [vmem:[#allocation7 + $0x2f0] sm:$0xff]
    %v517 = vld [vmem:[#allocation7 + $0x2f8] sm:$0xff]
    %v518 = vld [vmem:[#allocation7 + $0x300] sm:$0xff]
    %v519 = vld [vmem:[#allocation7 + $0x308] sm:$0xff]
    %v520 = vld [vmem:[#allocation7 + $0x310] sm:$0xff]
    %v521 = vld [vmem:[#allocation7 + $0x318] sm:$0xff]
    %v522 = vld [vmem:[#allocation7 + $0x320] sm:$0xff]
    %v523 = vld [vmem:[#allocation7 + $0x328] sm:$0xff]
    %v524 = vld [vmem:[#allocation7 + $0x330] sm:$0xff]
    %v525 = vld [vmem:[#allocation7 + $0x338] sm:$0xff]
    %v526 = vld [vmem:[#allocation7 + $0x340] sm:$0xff]
    %v527 = vld [vmem:[#allocation7 + $0x348] sm:$0xff]
    %v528 = vld [vmem:[#allocation7 + $0x350] sm:$0xff]
    %v529 = vld [vmem:[#allocation7 + $0x358] sm:$0xff]
    %v530 = vld [vmem:[#allocation7 + $0x360] sm:$0xff]
    %v531 = vld [vmem:[#allocation7 + $0x368] sm:$0xff]
    %v532 = vld [vmem:[#allocation7 + $0x370] sm:$0xff]
    %v533 = vld [vmem:[#allocation7 + $0x378] sm:$0xff]
    %v534 = vld [vmem:[#allocation7 + $0x380] sm:$0xff]
    %v535 = vld [vmem:[#allocation7 + $0x388] sm:$0xff]
    %v536 = vld [vmem:[#allocation7 + $0x390] sm:$0xff]
    %v537 = vld [vmem:[#allocation7 + $0x398] sm:$0xff]
    %v538 = vld [vmem:[#allocation7 + $0x3a0] sm:$0xff]
    %v539 = vld [vmem:[#allocation7 + $0x3a8] sm:$0xff]
    %v540 = vld [vmem:[#allocation7 + $0x3b0] sm:$0xff]
    %v541 = vld [vmem:[#allocation7 + $0x3b8] sm:$0xff]
    %v542 = vld [vmem:[#allocation7 + $0x3c0] sm:$0xff]
    %v543 = vld [vmem:[#allocation7 + $0x3c8] sm:$0xff]
    %v544 = vld [vmem:[#allocation7 + $0x3d0] sm:$0xff]
    %v545 = vld [vmem:[#allocation7 + $0x3d8] sm:$0xff]
    %v546 = vld [vmem:[#allocation7 + $0x3e0] sm:$0xff]
    %v547 = vld [vmem:[#allocation7 + $0x3e8] sm:$0xff]
    %v548 = vld [vmem:[#allocation7 + $0x3f0] sm:$0xff]
    %v549 = vld [vmem:[#allocation7 + $0x3f8] sm:$0xff]
    %v550 = vld [vmem:[%s4] sm:$0xf]
    %v552 = vlaneseq
    %v553 = vshrl.u32 %v552, 7
    %v554 = vsub.s32 0, %v553
    %v555 = vrot.slane %v550, %v554
    %v556 = vlaneseq
    %v557 = vshrl.u32 %v556, 7
    %v558 = vsub.s32 1, %v557
    %v559 = vrot.slane %v550, %v558
    %v560 = vlaneseq
    %v561 = vshrl.u32 %v560, 7
    %v562 = vsub.s32 2, %v561
    %v563 = vrot.slane %v550, %v562
    %v564 = vlaneseq
    %v565 = vshrl.u32 %v564, 7
    %v566 = vsub.s32 3, %v565
    %v567 = vrot.slane %v550, %v566
    %v700 = vunpack.c.l.b16 %v422
    %v701 = vunpack.c.h.b16 %v422
    %v702 = vunpack.c.l.b16 %v423
    %v703 = vunpack.c.h.b16 %v423
    %v704 = vunpack.c.l.b16 %v424
    %v705 = vunpack.c.h.b16 %v424
    %v706 = vunpack.c.l.b16 %v425
    %v707 = vunpack.c.h.b16 %v425
    %v708 = vunpack.c.l.b16 %v426
    %v709 = vunpack.c.h.b16 %v426
    %v710 = vunpack.c.l.b16 %v427
    %v711 = vunpack.c.h.b16 %v427
    %v712 = vunpack.c.l.b16 %v428
    %v713 = vunpack.c.h.b16 %v428
    %v714 = vunpack.c.l.b16 %v429
    %v715 = vunpack.c.h.b16 %v429
    %v716 = vunpack.c.l.b16 %v430
    %v717 = vunpack.c.h.b16 %v430
    %v718 = vunpack.c.l.b16 %v431
    %v719 = vunpack.c.h.b16 %v431
    %v720 = vunpack.c.l.b16 %v432
    %v721 = vunpack.c.h.b16 %v432
    %v722 = vunpack.c.l.b16 %v433
    %v723 = vunpack.c.h.b16 %v433
    %v724 = vunpack.c.l.b16 %v434
    %v725 = vunpack.c.h.b16 %v434
    %v726 = vunpack.c.l.b16 %v435
    %v727 = vunpack.c.h.b16 %v435
    %v728 = vunpack.c.l.b16 %v436
    %v729 = vunpack.c.h.b16 %v436
    %v730 = vunpack.c.l.b16 %v437
    %v731 = vunpack.c.h.b16 %v437
    %v732 = vunpack.c.l.b16 %v438
    %v733 = vunpack.c.h.b16 %v438
    %v734 = vunpack.c.l.b16 %v439
    %v735 = vunpack.c.h.b16 %v439
    %v736 = vunpack.c.l.b16 %v440
    %v737 = vunpack.c.h.b16 %v440
    %v738 = vunpack.c.l.b16 %v441
    %v739 = vunpack.c.h.b16 %v441
    %v740 = vunpack.c.l.b16 %v442
    %v741 = vunpack.c.h.b16 %v442
    %v742 = vunpack.c.l.b16 %v443
    %v743 = vunpack.c.h.b16 %v443
    %v744 = vunpack.c.l.b16 %v444
    %v745 = vunpack.c.h.b16 %v444
    %v746 = vunpack.c.l.b16 %v445
    %v747 = vunpack.c.h.b16 %v445
    %v748 = vunpack.c.l.b16 %v446
    %v749 = vunpack.c.h.b16 %v446
    %v750 = vunpack.c.l.b16 %v447
    %v751 = vunpack.c.h.b16 %v447
    %v752 = vunpack.c.l.b16 %v448
    %v753 = vunpack.c.h.b16 %v448
    %v754 = vunpack.c.l.b16 %v449
    %v755 = vunpack.c.h.b16 %v449
    %v756 = vunpack.c.l.b16 %v450
    %v757 = vunpack.c.h.b16 %v450
    %v758 = vunpack.c.l.b16 %v451
    %v759 = vunpack.c.h.b16 %v451
    %v760 = vunpack.c.l.b16 %v452
    %v761 = vunpack.c.h.b16 %v452
    %v762 = vunpack.c.l.b16 %v453
    %v763 = vunpack.c.h.b16 %v453
    %v764 = vunpack.c.l.b16 %v454
    %v765 = vunpack.c.h.b16 %v454
    %v766 = vunpack.c.l.b16 %v455
    %v767 = vunpack.c.h.b16 %v455
    %v768 = vunpack.c.l.b16 %v456
    %v769 = vunpack.c.h.b16 %v456
    %v770 = vunpack.c.l.b16 %v457
    %v771 = vunpack.c.h.b16 %v457
    %v772 = vunpack.c.l.b16 %v458
    %v773 = vunpack.c.h.b16 %v458
    %v774 = vunpack.c.l.b16 %v459
    %v775 = vunpack.c.h.b16 %v459
    %v776 = vunpack.c.l.b16 %v460
    %v777 = vunpack.c.h.b16 %v460
    %v778 = vunpack.c.l.b16 %v461
    %v779 = vunpack.c.h.b16 %v461
    %v780 = vunpack.c.l.b16 %v462
    %v781 = vunpack.c.h.b16 %v462
    %v782 = vunpack.c.l.b16 %v463
    %v783 = vunpack.c.h.b16 %v463
    %v784 = vunpack.c.l.b16 %v464
    %v785 = vunpack.c.h.b16 %v464
    %v786 = vunpack.c.l.b16 %v465
    %v787 = vunpack.c.h.b16 %v465
    %v788 = vunpack.c.l.b16 %v466
    %v789 = vunpack.c.h.b16 %v466
    %v790 = vunpack.c.l.b16 %v467
    %v791 = vunpack.c.h.b16 %v467
    %v792 = vunpack.c.l.b16 %v468
    %v793 = vunpack.c.h.b16 %v468
    %v794 = vunpack.c.l.b16 %v469
    %v795 = vunpack.c.h.b16 %v469
    %v796 = vunpack.c.l.b16 %v470
    %v797 = vunpack.c.h.b16 %v470
    %v798 = vunpack.c.l.b16 %v471
    %v799 = vunpack.c.h.b16 %v471
    %v800 = vunpack.c.l.b16 %v472
    %v801 = vunpack.c.h.b16 %v472
    %v802 = vunpack.c.l.b16 %v473
    %v803 = vunpack.c.h.b16 %v473
    %v804 = vunpack.c.l.b16 %v474
    %v805 = vunpack.c.h.b16 %v474
    %v806 = vunpack.c.l.b16 %v475
    %v807 = vunpack.c.h.b16 %v475
    %v808 = vunpack.c.l.b16 %v476
    %v809 = vunpack.c.h.b16 %v476
    %v810 = vunpack.c.l.b16 %v477
    %v811 = vunpack.c.h.b16 %v477
    %v812 = vunpack.c.l.b16 %v478
    %v813 = vunpack.c.h.b16 %v478
    %v814 = vunpack.c.l.b16 %v479
    %v815 = vunpack.c.h.b16 %v479
    %v816 = vunpack.c.l.b16 %v480
    %v817 = vunpack.c.h.b16 %v480
    %v818 = vunpack.c.l.b16 %v481
    %v819 = vunpack.c.h.b16 %v481
    %v820 = vunpack.c.l.b16 %v482
    %v821 = vunpack.c.h.b16 %v482
    %v822 = vunpack.c.l.b16 %v483
    %v823 = vunpack.c.h.b16 %v483
    %v824 = vunpack.c.l.b16 %v484
    %v825 = vunpack.c.h.b16 %v484
    %v826 = vunpack.c.l.b16 %v485
    %v827 = vunpack.c.h.b16 %v485
    %v828 = vunpack.c.l.b16 %v486
    %v829 = vunpack.c.h.b16 %v486
    %v830 = vunpack.c.l.b16 %v487
    %v831 = vunpack.c.h.b16 %v487
    %v832 = vunpack.c.l.b16 %v488
    %v833 = vunpack.c.h.b16 %v488
    %v834 = vunpack.c.l.b16 %v489
    %v835 = vunpack.c.h.b16 %v489
    %v836 = vunpack.c.l.b16 %v490
    %v837 = vunpack.c.h.b16 %v490
    %v838 = vunpack.c.l.b16 %v491
    %v839 = vunpack.c.h.b16 %v491
    %v840 = vunpack.c.l.b16 %v492
    %v841 = vunpack.c.h.b16 %v492
    %v842 = vunpack.c.l.b16 %v493
    %v843 = vunpack.c.h.b16 %v493
    %v844 = vunpack.c.l.b16 %v494
    %v845 = vunpack.c.h.b16 %v494
    %v846 = vunpack.c.l.b16 %v495
    %v847 = vunpack.c.h.b16 %v495
    %v848 = vunpack.c.l.b16 %v496
    %v849 = vunpack.c.h.b16 %v496
    %v850 = vunpack.c.l.b16 %v497
    %v851 = vunpack.c.h.b16 %v497
    %v852 = vunpack.c.l.b16 %v498
    %v853 = vunpack.c.h.b16 %v498
    %v854 = vunpack.c.l.b16 %v499
    %v855 = vunpack.c.h.b16 %v499
    %v856 = vunpack.c.l.b16 %v500
    %v857 = vunpack.c.h.b16 %v500
    %v858 = vunpack.c.l.b16 %v501
    %v859 = vunpack.c.h.b16 %v501
    %v860 = vunpack.c.l.b16 %v502
    %v861 = vunpack.c.h.b16 %v502
    %v862 = vunpack.c.l.b16 %v503
    %v863 = vunpack.c.h.b16 %v503
    %v864 = vunpack.c.l.b16 %v504
    %v865 = vunpack.c.h.b16 %v504
    %v866 = vunpack.c.l.b16 %v505
    %v867 = vunpack.c.h.b16 %v505
    %v868 = vunpack.c.l.b16 %v506
    %v869 = vunpack.c.h.b16 %v506
    %v870 = vunpack.c.l.b16 %v507
    %v871 = vunpack.c.h.b16 %v507
    %v872 = vunpack.c.l.b16 %v508
    %v873 = vunpack.c.h.b16 %v508
    %v874 = vunpack.c.l.b16 %v509
    %v875 = vunpack.c.h.b16 %v509
    %v876 = vunpack.c.l.b16 %v510
    %v877 = vunpack.c.h.b16 %v510
    %v878 = vunpack.c.l.b16 %v511
    %v879 = vunpack.c.h.b16 %v511
    %v880 = vunpack.c.l.b16 %v512
    %v881 = vunpack.c.h.b16 %v512
    %v882 = vunpack.c.l.b16 %v513
    %v883 = vunpack.c.h.b16 %v513
    %v884 = vunpack.c.l.b16 %v514
    %v885 = vunpack.c.h.b16 %v514
    %v886 = vunpack.c.l.b16 %v515
    %v887 = vunpack.c.h.b16 %v515
    %v888 = vunpack.c.l.b16 %v516
    %v889 = vunpack.c.h.b16 %v516
    %v890 = vunpack.c.l.b16 %v517
    %v891 = vunpack.c.h.b16 %v517
    %v892 = vunpack.c.l.b16 %v518
    %v893 = vunpack.c.h.b16 %v518
    %v894 = vunpack.c.l.b16 %v519
    %v895 = vunpack.c.h.b16 %v519
    %v896 = vunpack.c.l.b16 %v520
    %v897 = vunpack.c.h.b16 %v520
    %v898 = vunpack.c.l.b16 %v521
    %v899 = vunpack.c.h.b16 %v521
    %v900 = vunpack.c.l.b16 %v522
    %v901 = vunpack.c.h.b16 %v522
    %v902 = vunpack.c.l.b16 %v523
    %v903 = vunpack.c.h.b16 %v523
    %v904 = vunpack.c.l.b16 %v524
    %v905 = vunpack.c.h.b16 %v524
    %v906 = vunpack.c.l.b16 %v525
    %v907 = vunpack.c.h.b16 %v525
    %v908 = vunpack.c.l.b16 %v526
    %v909 = vunpack.c.h.b16 %v526
    %v910 = vunpack.c.l.b16 %v527
    %v911 = vunpack.c.h.b16 %v527
    %v912 = vunpack.c.l.b16 %v528
    %v913 = vunpack.c.h.b16 %v528
    %v914 = vunpack.c.l.b16 %v529
    %v915 = vunpack.c.h.b16 %v529
    %v916 = vunpack.c.l.b16 %v530
    %v917 = vunpack.c.h.b16 %v530
    %v918 = vunpack.c.l.b16 %v531
    %v919 = vunpack.c.h.b16 %v531
    %v920 = vunpack.c.l.b16 %v532
    %v921 = vunpack.c.h.b16 %v532
    %v922 = vunpack.c.l.b16 %v533
    %v923 = vunpack.c.h.b16 %v533
    %v924 = vunpack.c.l.b16 %v534
    %v925 = vunpack.c.h.b16 %v534
    %v926 = vunpack.c.l.b16 %v535
    %v927 = vunpack.c.h.b16 %v535
    %v928 = vunpack.c.l.b16 %v536
    %v929 = vunpack.c.h.b16 %v536
    %v930 = vunpack.c.l.b16 %v537
    %v931 = vunpack.c.h.b16 %v537
    %v932 = vunpack.c.l.b16 %v538
    %v933 = vunpack.c.h.b16 %v538
    %v934 = vunpack.c.l.b16 %v539
    %v935 = vunpack.c.h.b16 %v539
    %v936 = vunpack.c.l.b16 %v540
    %v937 = vunpack.c.h.b16 %v540
    %v938 = vunpack.c.l.b16 %v541
    %v939 = vunpack.c.h.b16 %v541
    %v940 = vunpack.c.l.b16 %v542
    %v941 = vunpack.c.h.b16 %v542
    %v942 = vunpack.c.l.b16 %v543
    %v943 = vunpack.c.h.b16 %v543
    %v944 = vunpack.c.l.b16 %v544
    %v945 = vunpack.c.h.b16 %v544
    %v946 = vunpack.c.l.b16 %v545
    %v947 = vunpack.c.h.b16 %v545
    %v948 = vunpack.c.l.b16 %v546
    %v949 = vunpack.c.h.b16 %v546
    %v950 = vunpack.c.l.b16 %v547
    %v951 = vunpack.c.h.b16 %v547
    %v952 = vunpack.c.l.b16 %v548
    %v953 = vunpack.c.h.b16 %v548
    %v954 = vunpack.c.l.b16 %v549
    %v955 = vunpack.c.h.b16 %v549
    %v956 = vpack.c.b16 %v704, %v700
    %v957 = vpack.c.b16 %v705, %v701
    %v958 = vpack.c.b16 %v706, %v702
    %v959 = vpack.c.b16 %v707, %v703
    %v960 = vpack.c.b16 %v712, %v708
    %v961 = vpack.c.b16 %v713, %v709
    %v962 = vpack.c.b16 %v714, %v710
    %v963 = vpack.c.b16 %v715, %v711
    %v964 = vpack.c.b16 %v720, %v716
    %v965 = vpack.c.b16 %v721, %v717
    %v966 = vpack.c.b16 %v722, %v718
    %v967 = vpack.c.b16 %v723, %v719
    %v968 = vpack.c.b16 %v728, %v724
    %v969 = vpack.c.b16 %v729, %v725
    %v970 = vpack.c.b16 %v730, %v726
    %v971 = vpack.c.b16 %v731, %v727
    %v972 = vpack.c.b16 %v736, %v732
    %v973 = vpack.c.b16 %v737, %v733
    %v974 = vpack.c.b16 %v738, %v734
    %v975 = vpack.c.b16 %v739, %v735
    %v976 = vpack.c.b16 %v744, %v740
    %v977 = vpack.c.b16 %v745, %v741
    %v978 = vpack.c.b16 %v746, %v742
    %v979 = vpack.c.b16 %v747, %v743
    %v980 = vpack.c.b16 %v752, %v748
    %v981 = vpack.c.b16 %v753, %v749
    %v982 = vpack.c.b16 %v754, %v750
    %v983 = vpack.c.b16 %v755, %v751
    %v984 = vpack.c.b16 %v760, %v756
    %v985 = vpack.c.b16 %v761, %v757
    %v986 = vpack.c.b16 %v762, %v758
    %v987 = vpack.c.b16 %v763, %v759
    %v988 = vpack.c.b16 %v768, %v764
    %v989 = vpack.c.b16 %v769, %v765
    %v990 = vpack.c.b16 %v770, %v766
    %v991 = vpack.c.b16 %v771, %v767
    %v992 = vpack.c.b16 %v776, %v772
    %v993 = vpack.c.b16 %v777, %v773
    %v994 = vpack.c.b16 %v778, %v774
    %v995 = vpack.c.b16 %v779, %v775
    %v996 = vpack.c.b16 %v784, %v780
    %v997 = vpack.c.b16 %v785, %v781
    %v998 = vpack.c.b16 %v786, %v782
    %v999 = vpack.c.b16 %v787, %v783
    %v1000 = vpack.c.b16 %v792, %v788
    %v1001 = vpack.c.b16 %v793, %v789
    %v1002 = vpack.c.b16 %v794, %v790
    %v1003 = vpack.c.b16 %v795, %v791
    %v1004 = vpack.c.b16 %v800, %v796
    %v1005 = vpack.c.b16 %v801, %v797
    %v1006 = vpack.c.b16 %v802, %v798
    %v1007 = vpack.c.b16 %v803, %v799
    %v1008 = vpack.c.b16 %v808, %v804
    %v1009 = vpack.c.b16 %v809, %v805
    %v1010 = vpack.c.b16 %v810, %v806
    %v1011 = vpack.c.b16 %v811, %v807
    %v1012 = vpack.c.b16 %v816, %v812
    %v1013 = vpack.c.b16 %v817, %v813
    %v1014 = vpack.c.b16 %v818, %v814
    %v1015 = vpack.c.b16 %v819, %v815
    %v1016 = vpack.c.b16 %v824, %v820
    %v1017 = vpack.c.b16 %v825, %v821
    %v1018 = vpack.c.b16 %v826, %v822
    %v1019 = vpack.c.b16 %v827, %v823
    %v1020 = vpack.c.b16 %v832, %v828
    %v1021 = vpack.c.b16 %v833, %v829
    %v1022 = vpack.c.b16 %v834, %v830
    %v1023 = vpack.c.b16 %v835, %v831
    %v1024 = vpack.c.b16 %v840, %v836
    %v1025 = vpack.c.b16 %v841, %v837
    %v1026 = vpack.c.b16 %v842, %v838
    %v1027 = vpack.c.b16 %v843, %v839
    %v1028 = vpack.c.b16 %v848, %v844
    %v1029 = vpack.c.b16 %v849, %v845
    %v1030 = vpack.c.b16 %v850, %v846
    %v1031 = vpack.c.b16 %v851, %v847
    %v1032 = vpack.c.b16 %v856, %v852
    %v1033 = vpack.c.b16 %v857, %v853
    %v1034 = vpack.c.b16 %v858, %v854
    %v1035 = vpack.c.b16 %v859, %v855
    %v1036 = vpack.c.b16 %v864, %v860
    %v1037 = vpack.c.b16 %v865, %v861
    %v1038 = vpack.c.b16 %v866, %v862
    %v1039 = vpack.c.b16 %v867, %v863
    %v1040 = vpack.c.b16 %v872, %v868
    %v1041 = vpack.c.b16 %v873, %v869
    %v1042 = vpack.c.b16 %v874, %v870
    %v1043 = vpack.c.b16 %v875, %v871
    %v1044 = vpack.c.b16 %v880, %v876
    %v1045 = vpack.c.b16 %v881, %v877
    %v1046 = vpack.c.b16 %v882, %v878
    %v1047 = vpack.c.b16 %v883, %v879
    %v1048 = vpack.c.b16 %v888, %v884
    %v1049 = vpack.c.b16 %v889, %v885
    %v1050 = vpack.c.b16 %v890, %v886
    %v1051 = vpack.c.b16 %v891, %v887
    %v1052 = vpack.c.b16 %v896, %v892
    %v1053 = vpack.c.b16 %v897, %v893
    %v1054 = vpack.c.b16 %v898, %v894
    %v1055 = vpack.c.b16 %v899, %v895
    %v1056 = vpack.c.b16 %v904, %v900
    %v1057 = vpack.c.b16 %v905, %v901
    %v1058 = vpack.c.b16 %v906, %v902
    %v1059 = vpack.c.b16 %v907, %v903
    %v1060 = vpack.c.b16 %v912, %v908
    %v1061 = vpack.c.b16 %v913, %v909
    %v1062 = vpack.c.b16 %v914, %v910
    %v1063 = vpack.c.b16 %v915, %v911
    %v1064 = vpack.c.b16 %v920, %v916
    %v1065 = vpack.c.b16 %v921, %v917
    %v1066 = vpack.c.b16 %v922, %v918
    %v1067 = vpack.c.b16 %v923, %v919
    %v1068 = vpack.c.b16 %v928, %v924
    %v1069 = vpack.c.b16 %v929, %v925
    %v1070 = vpack.c.b16 %v930, %v926
    %v1071 = vpack.c.b16 %v931, %v927
    %v1072 = vpack.c.b16 %v936, %v932
    %v1073 = vpack.c.b16 %v937, %v933
    %v1074 = vpack.c.b16 %v938, %v934
    %v1075 = vpack.c.b16 %v939, %v935
    %v1076 = vpack.c.b16 %v944, %v940
    %v1077 = vpack.c.b16 %v945, %v941
    %v1078 = vpack.c.b16 %v946, %v942
    %v1079 = vpack.c.b16 %v947, %v943
    %v1080 = vpack.c.b16 %v952, %v948
    %v1081 = vpack.c.b16 %v953, %v949
    %v1082 = vpack.c.b16 %v954, %v950
    %v1083 = vpack.c.b16 %v955, %v951
    %1212 = vmatprep.subr.bf16.mxu0 %v957
    %1213 = vmatpush1.bf16.msra.mxu0 %v956
    %1214 = vmatprep.subr.bf16.mxu0 %v961
    %1215 = vmatpush1.bf16.msra.mxu0 %v960
    %1216 = vmatprep.subr.bf16.mxu0 %v965
    %1217 = vmatpush1.bf16.msra.mxu0 %v964
    %1218 = vmatprep.subr.bf16.mxu0 %v969
    %1219 = vmatpush1.bf16.msra.mxu0 %v968
    %1220 = vmatprep.subr.bf16.mxu0 %v973
    %1221 = vmatpush1.bf16.msra.mxu0 %v972
    %1222 = vmatprep.subr.bf16.mxu0 %v977
    %1223 = vmatpush1.bf16.msra.mxu0 %v976
    %1224 = vmatprep.subr.bf16.mxu0 %v981
    %1225 = vmatpush1.bf16.msra.mxu0 %v980
    %1226 = vmatprep.subr.bf16.mxu0 %v985
    %1227 = vmatpush1.bf16.msra.mxu0 %v984
    %1228 = vmatprep.subr.bf16.mxu0 %v989
    %1229 = vmatpush1.bf16.msra.mxu0 %v988
    %1230 = vmatprep.subr.bf16.mxu0 %v993
    %1231 = vmatpush1.bf16.msra.mxu0 %v992
    %1232 = vmatprep.subr.bf16.mxu0 %v997
    %1233 = vmatpush1.bf16.msra.mxu0 %v996
    %1234 = vmatprep.subr.bf16.mxu0 %v1001
    %1235 = vmatpush1.bf16.msra.mxu0 %v1000
    %1236 = vmatprep.subr.bf16.mxu0 %v1005
    %1237 = vmatpush1.bf16.msra.mxu0 %v1004
    %1238 = vmatprep.subr.bf16.mxu0 %v1009
    %1239 = vmatpush1.bf16.msra.mxu0 %v1008
    %1240 = vmatprep.subr.bf16.mxu0 %v1013
    %1241 = vmatpush1.bf16.msra.mxu0 %v1012
    %1242 = vmatprep.subr.bf16.mxu0 %v1017
    %1243 = vmatpush1.bf16.msra.mxu0 %v1016
    %1244 = vmatprep.mubr.bf16.mxu0 %v419
    %1245 = vmatmul.mubr.bf16.gmra.mrb[0].mxu0 %v418
    %v1246 = vpop.f32.mrb[0].mxu0
    %v1247 = vadd.f32 %v555, %v1246
    %v1248 = vpop.f32.mrb[0].mxu0
    %v1249 = vadd.f32 %v559, %v1248
    %v1250 = vpop.f32.mrb[0].mxu0
    %v1251 = vadd.f32 %v555, %v1250
    %v1252 = vpop.f32.mrb[0].mxu0
    %v1253 = vadd.f32 %v559, %v1252
    %1254 = vdwg.mxu0
    %1255 = vmatprep.subr.bf16.mxu0 %v1021
    %1256 = vmatpush1.bf16.msra.mxu0 %v1020
    %1257 = vmatprep.subr.bf16.mxu0 %v1025
    %1258 = vmatpush1.bf16.msra.mxu0 %v1024
    %1259 = vmatprep.subr.bf16.mxu0 %v1029
    %1260 = vmatpush1.bf16.msra.mxu0 %v1028
    %1261 = vmatprep.subr.bf16.mxu0 %v1033
    %1262 = vmatpush1.bf16.msra.mxu0 %v1032
    %1263 = vmatprep.subr.bf16.mxu0 %v1037
    %1264 = vmatpush1.bf16.msra.mxu0 %v1036
    %1265 = vmatprep.subr.bf16.mxu0 %v1041
    %1266 = vmatpush1.bf16.msra.mxu0 %v1040
    %1267 = vmatprep.subr.bf16.mxu0 %v1045
    %1268 = vmatpush1.bf16.msra.mxu0 %v1044
    %1269 = vmatprep.subr.bf16.mxu0 %v1049
    %1270 = vmatpush1.bf16.msra.mxu0 %v1048
    %1271 = vmatprep.subr.bf16.mxu0 %v1053
    %1272 = vmatpush1.bf16.msra.mxu0 %v1052
    %1273 = vmatprep.subr.bf16.mxu0 %v1057
    %1274 = vmatpush1.bf16.msra.mxu0 %v1056
    %1275 = vmatprep.subr.bf16.mxu0 %v1061
    %1276 = vmatpush1.bf16.msra.mxu0 %v1060
    %1277 = vmatprep.subr.bf16.mxu0 %v1065
    %1278 = vmatpush1.bf16.msra.mxu0 %v1064
    %1279 = vmatprep.subr.bf16.mxu0 %v1069
    %1280 = vmatpush1.bf16.msra.mxu0 %v1068
    %1281 = vmatprep.subr.bf16.mxu0 %v1073
    %1282 = vmatpush1.bf16.msra.mxu0 %v1072
    %1283 = vmatprep.subr.bf16.mxu0 %v1077
    %1284 = vmatpush1.bf16.msra.mxu0 %v1076
    %1285 = vmatprep.subr.bf16.mxu0 %v1081
    %1286 = vmatpush1.bf16.msra.mxu0 %v1080
    %1287 = vmatprep.mubr.bf16.mxu0 %v421
    %1288 = vmatmul.mubr.bf16.gmra.mrb[0].mxu0 %v420
    %v1289 = vpop.f32.mrb[0].mxu0
    %v1290 = vadd.f32 %v1247, %v1289
    %v1291 = vpop.f32.mrb[0].mxu0
    %v1292 = vadd.f32 %v1249, %v1291
    %v1293 = vpop.f32.mrb[0].mxu0
    %v1294 = vadd.f32 %v1251, %v1293
    %v1295 = vpop.f32.mrb[0].mxu0
    %v1296 = vadd.f32 %v1253, %v1295
    %1297 = vdwg.mxu0
    %1298 = vmatprep.subr.bf16.mxu0 %v959
    %1299 = vmatpush1.bf16.msra.mxu0 %v958
    %1300 = vmatprep.subr.bf16.mxu0 %v963
    %1301 = vmatpush1.bf16.msra.mxu0 %v962
    %1302 = vmatprep.subr.bf16.mxu0 %v967
    %1303 = vmatpush1.bf16.msra.mxu0 %v966
    %1304 = vmatprep.subr.bf16.mxu0 %v971
    %1305 = vmatpush1.bf16.msra.mxu0 %v970
    %1306 = vmatprep.subr.bf16.mxu0 %v975
    %1307 = vmatpush1.bf16.msra.mxu0 %v974
    %1308 = vmatprep.subr.bf16.mxu0 %v979
    %1309 = vmatpush1.bf16.msra.mxu0 %v978
    %1310 = vmatprep.subr.bf16.mxu0 %v983
    %1311 = vmatpush1.bf16.msra.mxu0 %v982
    %1312 = vmatprep.subr.bf16.mxu0 %v987
    %1313 = vmatpush1.bf16.msra.mxu0 %v986
    %1314 = vmatprep.subr.bf16.mxu0 %v991
    %1315 = vmatpush1.bf16.msra.mxu0 %v990
    %1316 = vmatprep.subr.bf16.mxu0 %v995
    %1317 = vmatpush1.bf16.msra.mxu0 %v994
    %1318 = vmatprep.subr.bf16.mxu0 %v999
    %1319 = vmatpush1.bf16.msra.mxu0 %v998
    %1320 = vmatprep.subr.bf16.mxu0 %v1003
    %1321 = vmatpush1.bf16.msra.mxu0 %v1002
    %1322 = vmatprep.subr.bf16.mxu0 %v1007
    %1323 = vmatpush1.bf16.msra.mxu0 %v1006
    %1324 = vmatprep.subr.bf16.mxu0 %v1011
    %1325 = vmatpush1.bf16.msra.mxu0 %v1010
    %1326 = vmatprep.subr.bf16.mxu0 %v1015
    %1327 = vmatpush1.bf16.msra.mxu0 %v1014
    %1328 = vmatprep.subr.bf16.mxu0 %v1019
    %1329 = vmatpush1.bf16.msra.mxu0 %v1018
    %1330 = vmatprep.mubr.bf16.mxu0 %v419
    %1331 = vmatmul.mubr.bf16.gmra.mrb[0].mxu0 %v418
    %v1332 = vpop.f32.mrb[0].mxu0
    %v1333 = vadd.f32 %v563, %v1332
    %v1334 = vpop.f32.mrb[0].mxu0
    %v1335 = vadd.f32 %v567, %v1334
    %v1336 = vpop.f32.mrb[0].mxu0
    %v1337 = vadd.f32 %v563, %v1336
    %v1338 = vpop.f32.mrb[0].mxu0
    %v1339 = vadd.f32 %v567, %v1338
    %1340 = vdwg.mxu0
    %1341 = vmatprep.subr.bf16.mxu0 %v1023
    %1342 = vmatpush1.bf16.msra.mxu0 %v1022
    %1343 = vmatprep.subr.bf16.mxu0 %v1027
    %1344 = vmatpush1.bf16.msra.mxu0 %v1026
    %1345 = vmatprep.subr.bf16.mxu0 %v1031
    %1346 = vmatpush1.bf16.msra.mxu0 %v1030
    %1347 = vmatprep.subr.bf16.mxu0 %v1035
    %1348 = vmatpush1.bf16.msra.mxu0 %v1034
    %1349 = vmatprep.subr.bf16.mxu0 %v1039
    %1350 = vmatpush1.bf16.msra.mxu0 %v1038
    %1351 = vmatprep.subr.bf16.mxu0 %v1043
    %1352 = vmatpush1.bf16.msra.mxu0 %v1042
    %1353 = vmatprep.subr.bf16.mxu0 %v1047
    %1354 = vmatpush1.bf16.msra.mxu0 %v1046
    %1355 = vmatprep.subr.bf16.mxu0 %v1051
    %1356 = vmatpush1.bf16.msra.mxu0 %v1050
    %1357 = vmatprep.subr.bf16.mxu0 %v1055
    %1358 = vmatpush1.bf16.msra.mxu0 %v1054
    %1359 = vmatprep.subr.bf16.mxu0 %v1059
    %1360 = vmatpush1.bf16.msra.mxu0 %v1058
    %1361 = vmatprep.subr.bf16.mxu0 %v1063
    %1362 = vmatpush1.bf16.msra.mxu0 %v1062
    %1363 = vmatprep.subr.bf16.mxu0 %v1067
    %1364 = vmatpush1.bf16.msra.mxu0 %v1066
    %1365 = vmatprep.subr.bf16.mxu0 %v1071
    %1366 = vmatpush1.bf16.msra.mxu0 %v1070
    %1367 = vmatprep.subr.bf16.mxu0 %v1075
    %1368 = vmatpush1.bf16.msra.mxu0 %v1074
    %1369 = vmatprep.subr.bf16.mxu0 %v1079
    %1370 = vmatpush1.bf16.msra.mxu0 %v1078
    %1371 = vmatprep.subr.bf16.mxu0 %v1083
    %1372 = vmatpush1.bf16.msra.mxu0 %v1082
    %1373 = vmatprep.mubr.bf16.mxu0 %v421
    %1374 = vmatmul.mubr.bf16.gmra.mrb[0].mxu0 %v420
    %v1375 = vpop.f32.mrb[0].mxu0
    %v1376 = vadd.f32 %v1333, %v1375
    %v1377 = vpop.f32.mrb[0].mxu0
    %v1378 = vadd.f32 %v1335, %v1377
    %v1379 = vpop.f32.mrb[0].mxu0
    %v1380 = vadd.f32 %v1337, %v1379
    %v1381 = vpop.f32.mrb[0].mxu0
    %v1382 = vadd.f32 %v1339, %v1381
    %1383 = vdwg.mxu0
    %v1384 = vmax.f32 %v1290, 0.0
    %v1385 = vmax.f32 %v1292, 0.0
    %v1386 = vmax.f32 %v1376, 0.0
    %v1387 = vmax.f32 %v1378, 0.0
    %v1388 = vmax.f32 %v1294, 0.0
    %v1389 = vmax.f32 %v1296, 0.0
    %v1390 = vmax.f32 %v1380, 0.0
    %v1391 = vmax.f32 %v1382, 0.0
    %v1392 = vpack.c.bf16 %v1388, %v1384
    %v1393 = vpack.c.bf16 %v1389, %v1385
    %v1394 = vpack.c.bf16 %v1390, %v1386
    %v1395 = vpack.c.bf16 %v1391, %v1387
    %v1396 = vld [vmem:[#allocation8] sm:$0xff]
    %v1397 = vld [vmem:[#allocation8 + $0x8] sm:$0xff]
    %v1398 = vld [vmem:[#allocation8 + $0x10] sm:$0xff]
    %v1399 = vld [vmem:[#allocation8 + $0x18] sm:$0xff]
    %v1400 = vld [vmem:[#allocation8 + $0x20] sm:$0xff]
    %v1401 = vld [vmem:[#allocation8 + $0x28] sm:$0xff]
    %v1402 = vld [vmem:[#allocation8 + $0x30] sm:$0xff]
    %v1403 = vld [vmem:[#allocation8 + $0x38] sm:$0xff]
    %v1404 = vld [vmem:[#allocation8 + $0x40] sm:$0xff]
    %v1405 = vld [vmem:[#allocation8 + $0x48] sm:$0xff]
    %v1406 = vld [vmem:[#allocation8 + $0x50] sm:$0xff]
    %v1407 = vld [vmem:[#allocation8 + $0x58] sm:$0xff]
    %v1408 = vld [vmem:[#allocation8 + $0x60] sm:$0xff]
    %v1409 = vld [vmem:[#allocation8 + $0x68] sm:$0xff]
    %v1410 = vld [vmem:[#allocation8 + $0x70] sm:$0xff]
    %v1411 = vld [vmem:[#allocation8 + $0x78] sm:$0xff]
    %v1412 = vld [vmem:[#allocation8 + $0x80] sm:$0xff]
    %v1413 = vld [vmem:[#allocation8 + $0x88] sm:$0xff]
    %v1414 = vld [vmem:[#allocation8 + $0x90] sm:$0xff]
    %v1415 = vld [vmem:[#allocation8 + $0x98] sm:$0xff]
    %v1416 = vld [vmem:[#allocation8 + $0xa0] sm:$0xff]
    %v1417 = vld [vmem:[#allocation8 + $0xa8] sm:$0xff]
    %v1418 = vld [vmem:[#allocation8 + $0xb0] sm:$0xff]
    %v1419 = vld [vmem:[#allocation8 + $0xb8] sm:$0xff]
    %v1420 = vld [vmem:[#allocation8 + $0xc0] sm:$0xff]
    %v1421 = vld [vmem:[#allocation8 + $0xc8] sm:$0xff]
    %v1422 = vld [vmem:[#allocation8 + $0xd0] sm:$0xff]
    %v1423 = vld [vmem:[#allocation8 + $0xd8] sm:$0xff]
    %v1424 = vld [vmem:[#allocation8 + $0xe0] sm:$0xff]
    %v1425 = vld [vmem:[#allocation8 + $0xe8] sm:$0xff]
    %v1426 = vld [vmem:[#allocation8 + $0xf0] sm:$0xff]
    %v1427 = vld [vmem:[#allocation8 + $0xf8] sm:$0xff]
    %v1428 = vld [vmem:[#allocation8 + $0x100] sm:$0xff]
    %v1429 = vld [vmem:[#allocation8 + $0x108] sm:$0xff]
    %v1430 = vld [vmem:[#allocation8 + $0x110] sm:$0xff]
    %v1431 = vld [vmem:[#allocation8 + $0x118] sm:$0xff]
    %v1432 = vld [vmem:[#allocation8 + $0x120] sm:$0xff]
    %v1433 = vld [vmem:[#allocation8 + $0x128] sm:$0xff]
    %v1434 = vld [vmem:[#allocation8 + $0x130] sm:$0xff]
    %v1435 = vld [vmem:[#allocation8 + $0x138] sm:$0xff]
    %v1436 = vld [vmem:[#allocation8 + $0x140] sm:$0xff]
    %v1437 = vld [vmem:[#allocation8 + $0x148] sm:$0xff]
    %v1438 = vld [vmem:[#allocation8 + $0x150] sm:$0xff]
    %v1439 = vld [vmem:[#allocation8 + $0x158] sm:$0xff]
    %v1440 = vld [vmem:[#allocation8 + $0x160] sm:$0xff]
    %v1441 = vld [vmem:[#allocation8 + $0x168] sm:$0xff]
    %v1442 = vld [vmem:[#allocation8 + $0x170] sm:$0xff]
    %v1443 = vld [vmem:[#allocation8 + $0x178] sm:$0xff]
    %v1444 = vld [vmem:[#allocation8 + $0x180] sm:$0xff]
    %v1445 = vld [vmem:[#allocation8 + $0x188] sm:$0xff]
    %v1446 = vld [vmem:[#allocation8 + $0x190] sm:$0xff]
    %v1447 = vld [vmem:[#allocation8 + $0x198] sm:$0xff]
    %v1448 = vld [vmem:[#allocation8 + $0x1a0] sm:$0xff]
    %v1449 = vld [vmem:[#allocation8 + $0x1a8] sm:$0xff]
    %v1450 = vld [vmem:[#allocation8 + $0x1b0] sm:$0xff]
    %v1451 = vld [vmem:[#allocation8 + $0x1b8] sm:$0xff]
    %v1452 = vld [vmem:[#allocation8 + $0x1c0] sm:$0xff]
    %v1453 = vld [vmem:[#allocation8 + $0x1c8] sm:$0xff]
    %v1454 = vld [vmem:[#allocation8 + $0x1d0] sm:$0xff]
    %v1455 = vld [vmem:[#allocation8 + $0x1d8] sm:$0xff]
    %v1456 = vld [vmem:[#allocation8 + $0x1e0] sm:$0xff]
    %v1457 = vld [vmem:[#allocation8 + $0x1e8] sm:$0xff]
    %v1458 = vld [vmem:[#allocation8 + $0x1f0] sm:$0xff]
    %v1459 = vld [vmem:[#allocation8 + $0x1f8] sm:$0xff]
    %v1460 = vld [vmem:[%s6] sm:$0x3]
    %v1462 = vlaneseq
    %v1463 = vshrl.u32 %v1462, 7
    %v1464 = vsub.s32 0, %v1463
    %v1465 = vrot.slane %v1460, %v1464
    %v1466 = vlaneseq
    %v1467 = vshrl.u32 %v1466, 7
    %v1468 = vsub.s32 1, %v1467
    %v1469 = vrot.slane %v1460, %v1468
    %v1536 = vunpack.c.l.b16 %v1396
    %v1537 = vunpack.c.h.b16 %v1396
    %v1538 = vunpack.c.l.b16 %v1397
    %v1539 = vunpack.c.h.b16 %v1397
    %v1540 = vunpack.c.l.b16 %v1398
    %v1541 = vunpack.c.h.b16 %v1398
    %v1542 = vunpack.c.l.b16 %v1399
    %v1543 = vunpack.c.h.b16 %v1399
    %v1544 = vunpack.c.l.b16 %v1400
    %v1545 = vunpack.c.h.b16 %v1400
    %v1546 = vunpack.c.l.b16 %v1401
    %v1547 = vunpack.c.h.b16 %v1401
    %v1548 = vunpack.c.l.b16 %v1402
    %v1549 = vunpack.c.h.b16 %v1402
    %v1550 = vunpack.c.l.b16 %v1403
    %v1551 = vunpack.c.h.b16 %v1403
    %v1552 = vunpack.c.l.b16 %v1404
    %v1553 = vunpack.c.h.b16 %v1404
    %v1554 = vunpack.c.l.b16 %v1405
    %v1555 = vunpack.c.h.b16 %v1405
    %v1556 = vunpack.c.l.b16 %v1406
    %v1557 = vunpack.c.h.b16 %v1406
    %v1558 = vunpack.c.l.b16 %v1407
    %v1559 = vunpack.c.h.b16 %v1407
    %v1560 = vunpack.c.l.b16 %v1408
    %v1561 = vunpack.c.h.b16 %v1408
    %v1562 = vunpack.c.l.b16 %v1409
    %v1563 = vunpack.c.h.b16 %v1409
    %v1564 = vunpack.c.l.b16 %v1410
    %v1565 = vunpack.c.h.b16 %v1410
    %v1566 = vunpack.c.l.b16 %v1411
    %v1567 = vunpack.c.h.b16 %v1411
    %v1568 = vunpack.c.l.b16 %v1412
    %v1569 = vunpack.c.h.b16 %v1412
    %v1570 = vunpack.c.l.b16 %v1413
    %v1571 = vunpack.c.h.b16 %v1413
    %v1572 = vunpack.c.l.b16 %v1414
    %v1573 = vunpack.c.h.b16 %v1414
    %v1574 = vunpack.c.l.b16 %v1415
    %v1575 = vunpack.c.h.b16 %v1415
    %v1576 = vunpack.c.l.b16 %v1416
    %v1577 = vunpack.c.h.b16 %v1416
    %v1578 = vunpack.c.l.b16 %v1417
    %v1579 = vunpack.c.h.b16 %v1417
    %v1580 = vunpack.c.l.b16 %v1418
    %v1581 = vunpack.c.h.b16 %v1418
    %v1582 = vunpack.c.l.b16 %v1419
    %v1583 = vunpack.c.h.b16 %v1419
    %v1584 = vunpack.c.l.b16 %v1420
    %v1585 = vunpack.c.h.b16 %v1420
    %v1586 = vunpack.c.l.b16 %v1421
    %v1587 = vunpack.c.h.b16 %v1421
    %v1588 = vunpack.c.l.b16 %v1422
    %v1589 = vunpack.c.h.b16 %v1422
    %v1590 = vunpack.c.l.b16 %v1423
    %v1591 = vunpack.c.h.b16 %v1423
    %v1592 = vunpack.c.l.b16 %v1424
    %v1593 = vunpack.c.h.b16 %v1424
    %v1594 = vunpack.c.l.b16 %v1425
    %v1595 = vunpack.c.h.b16 %v1425
    %v1596 = vunpack.c.l.b16 %v1426
    %v1597 = vunpack.c.h.b16 %v1426
    %v1598 = vunpack.c.l.b16 %v1427
    %v1599 = vunpack.c.h.b16 %v1427
    %v1600 = vunpack.c.l.b16 %v1428
    %v1601 = vunpack.c.h.b16 %v1428
    %v1602 = vunpack.c.l.b16 %v1429
    %v1603 = vunpack.c.h.b16 %v1429
    %v1604 = vunpack.c.l.b16 %v1430
    %v1605 = vunpack.c.h.b16 %v1430
    %v1606 = vunpack.c.l.b16 %v1431
    %v1607 = vunpack.c.h.b16 %v1431
    %v1608 = vunpack.c.l.b16 %v1432
    %v1609 = vunpack.c.h.b16 %v1432
    %v1610 = vunpack.c.l.b16 %v1433
    %v1611 = vunpack.c.h.b16 %v1433
    %v1612 = vunpack.c.l.b16 %v1434
    %v1613 = vunpack.c.h.b16 %v1434
    %v1614 = vunpack.c.l.b16 %v1435
    %v1615 = vunpack.c.h.b16 %v1435
    %v1616 = vunpack.c.l.b16 %v1436
    %v1617 = vunpack.c.h.b16 %v1436
    %v1618 = vunpack.c.l.b16 %v1437
    %v1619 = vunpack.c.h.b16 %v1437
    %v1620 = vunpack.c.l.b16 %v1438
    %v1621 = vunpack.c.h.b16 %v1438
    %v1622 = vunpack.c.l.b16 %v1439
    %v1623 = vunpack.c.h.b16 %v1439
    %v1624 = vunpack.c.l.b16 %v1440
    %v1625 = vunpack.c.h.b16 %v1440
    %v1626 = vunpack.c.l.b16 %v1441
    %v1627 = vunpack.c.h.b16 %v1441
    %v1628 = vunpack.c.l.b16 %v1442
    %v1629 = vunpack.c.h.b16 %v1442
    %v1630 = vunpack.c.l.b16 %v1443
    %v1631 = vunpack.c.h.b16 %v1443
    %v1632 = vunpack.c.l.b16 %v1444
    %v1633 = vunpack.c.h.b16 %v1444
    %v1634 = vunpack.c.l.b16 %v1445
    %v1635 = vunpack.c.h.b16 %v1445
    %v1636 = vunpack.c.l.b16 %v1446
    %v1637 = vunpack.c.h.b16 %v1446
    %v1638 = vunpack.c.l.b16 %v1447
    %v1639 = vunpack.c.h.b16 %v1447
    %v1640 = vunpack.c.l.b16 %v1448
    %v1641 = vunpack.c.h.b16 %v1448
    %v1642 = vunpack.c.l.b16 %v1449
    %v1643 = vunpack.c.h.b16 %v1449
    %v1644 = vunpack.c.l.b16 %v1450
    %v1645 = vunpack.c.h.b16 %v1450
    %v1646 = vunpack.c.l.b16 %v1451
    %v1647 = vunpack.c.h.b16 %v1451
    %v1648 = vunpack.c.l.b16 %v1452
    %v1649 = vunpack.c.h.b16 %v1452
    %v1650 = vunpack.c.l.b16 %v1453
    %v1651 = vunpack.c.h.b16 %v1453
    %v1652 = vunpack.c.l.b16 %v1454
    %v1653 = vunpack.c.h.b16 %v1454
    %v1654 = vunpack.c.l.b16 %v1455
    %v1655 = vunpack.c.h.b16 %v1455
    %v1656 = vunpack.c.l.b16 %v1456
    %v1657 = vunpack.c.h.b16 %v1456
    %v1658 = vunpack.c.l.b16 %v1457
    %v1659 = vunpack.c.h.b16 %v1457
    %v1660 = vunpack.c.l.b16 %v1458
    %v1661 = vunpack.c.h.b16 %v1458
    %v1662 = vunpack.c.l.b16 %v1459
    %v1663 = vunpack.c.h.b16 %v1459
    %v1664 = vpack.c.b16 %v1538, %v1536
    %v1665 = vpack.c.b16 %v1539, %v1537
    %v1666 = vpack.c.b16 %v1542, %v1540
    %v1667 = vpack.c.b16 %v1543, %v1541
    %v1668 = vpack.c.b16 %v1546, %v1544
    %v1669 = vpack.c.b16 %v1547, %v1545
    %v1670 = vpack.c.b16 %v1550, %v1548
    %v1671 = vpack.c.b16 %v1551, %v1549
    %v1672 = vpack.c.b16 %v1554, %v1552
    %v1673 = vpack.c.b16 %v1555, %v1553
    %v1674 = vpack.c.b16 %v1558, %v1556
    %v1675 = vpack.c.b16 %v1559, %v1557
    %v1676 = vpack.c.b16 %v1562, %v1560
    %v1677 = vpack.c.b16 %v1563, %v1561
    %v1678 = vpack.c.b16 %v1566, %v1564
    %v1679 = vpack.c.b16 %v1567, %v1565
    %v1680 = vpack.c.b16 %v1570, %v1568
    %v1681 = vpack.c.b16 %v1571, %v1569
    %v1682 = vpack.c.b16 %v1574, %v1572
    %v1683 = vpack.c.b16 %v1575, %v1573
    %v1684 = vpack.c.b16 %v1578, %v1576
    %v1685 = vpack.c.b16 %v1579, %v1577
    %v1686 = vpack.c.b16 %v1582, %v1580
    %v1687 = vpack.c.b16 %v1583, %v1581
    %v1688 = vpack.c.b16 %v1586, %v1584
    %v1689 = vpack.c.b16 %v1587, %v1585
    %v1690 = vpack.c.b16 %v1590, %v1588
    %v1691 = vpack.c.b16 %v1591, %v1589
    %v1692 = vpack.c.b16 %v1594, %v1592
    %v1693 = vpack.c.b16 %v1595, %v1593
    %v1694 = vpack.c.b16 %v1598, %v1596
    %v1695 = vpack.c.b16 %v1599, %v1597
    %v1696 = vpack.c.b16 %v1602, %v1600
    %v1697 = vpack.c.b16 %v1603, %v1601
    %v1698 = vpack.c.b16 %v1606, %v1604
    %v1699 = vpack.c.b16 %v1607, %v1605
    %v1700 = vpack.c.b16 %v1610, %v1608
    %v1701 = vpack.c.b16 %v1611, %v1609
    %v1702 = vpack.c.b16 %v1614, %v1612
    %v1703 = vpack.c.b16 %v1615, %v1613
    %v1704 = vpack.c.b16 %v1618, %v1616
    %v1705 = vpack.c.b16 %v1619, %v1617
    %v1706 = vpack.c.b16 %v1622, %v1620
    %v1707 = vpack.c.b16 %v1623, %v1621
    %v1708 = vpack.c.b16 %v1626, %v1624
    %v1709 = vpack.c.b16 %v1627, %v1625
    %v1710 = vpack.c.b16 %v1630, %v1628
    %v1711 = vpack.c.b16 %v1631, %v1629
    %v1712 = vpack.c.b16 %v1634, %v1632
    %v1713 = vpack.c.b16 %v1635, %v1633
    %v1714 = vpack.c.b16 %v1638, %v1636
    %v1715 = vpack.c.b16 %v1639, %v1637
    %v1716 = vpack.c.b16 %v1642, %v1640
    %v1717 = vpack.c.b16 %v1643, %v1641
    %v1718 = vpack.c.b16 %v1646, %v1644
    %v1719 = vpack.c.b16 %v1647, %v1645
    %v1720 = vpack.c.b16 %v1650, %v1648
    %v1721 = vpack.c.b16 %v1651, %v1649
    %v1722 = vpack.c.b16 %v1654, %v1652
    %v1723 = vpack.c.b16 %v1655, %v1653
    %v1724 = vpack.c.b16 %v1658, %v1656
    %v1725 = vpack.c.b16 %v1659, %v1657
    %v1726 = vpack.c.b16 %v1662, %v1660
    %v1727 = vpack.c.b16 %v1663, %v1661
    %1792 = vmatprep.subr.bf16.mxu0 %v1665
    %1793 = vmatpush1.bf16.msra.mxu0 %v1664
    %1794 = vmatprep.subr.bf16.mxu0 %v1667
    %1795 = vmatpush1.bf16.msra.mxu0 %v1666
    %1796 = vmatprep.subr.bf16.mxu0 %v1669
    %1797 = vmatpush1.bf16.msra.mxu0 %v1668
    %1798 = vmatprep.subr.bf16.mxu0 %v1671
    %1799 = vmatpush1.bf16.msra.mxu0 %v1670
    %1800 = vmatprep.subr.bf16.mxu0 %v1673
    %1801 = vmatpush1.bf16.msra.mxu0 %v1672
    %1802 = vmatprep.subr.bf16.mxu0 %v1675
    %1803 = vmatpush1.bf16.msra.mxu0 %v1674
    %1804 = vmatprep.subr.bf16.mxu0 %v1677
    %1805 = vmatpush1.bf16.msra.mxu0 %v1676
    %1806 = vmatprep.subr.bf16.mxu0 %v1679
    %1807 = vmatpush1.bf16.msra.mxu0 %v1678
    %1808 = vmatprep.subr.bf16.mxu0 %v1681
    %1809 = vmatpush1.bf16.msra.mxu0 %v1680
    %1810 = vmatprep.subr.bf16.mxu0 %v1683
    %1811 = vmatpush1.bf16.msra.mxu0 %v1682
    %1812 = vmatprep.subr.bf16.mxu0 %v1685
    %1813 = vmatpush1.bf16.msra.mxu0 %v1684
    %1814 = vmatprep.subr.bf16.mxu0 %v1687
    %1815 = vmatpush1.bf16.msra.mxu0 %v1686
    %1816 = vmatprep.subr.bf16.mxu0 %v1689
    %1817 = vmatpush1.bf16.msra.mxu0 %v1688
    %1818 = vmatprep.subr.bf16.mxu0 %v1691
    %1819 = vmatpush1.bf16.msra.mxu0 %v1690
    %1820 = vmatprep.subr.bf16.mxu0 %v1693
    %1821 = vmatpush1.bf16.msra.mxu0 %v1692
    %1822 = vmatprep.subr.bf16.mxu0 %v1695
    %1823 = vmatpush1.bf16.msra.mxu0 %v1694
    %1824 = vmatprep.mubr.bf16.mxu0 %v1393
    %1825 = vmatmul.mubr.bf16.gmra.mrb[0].mxu0 %v1392
    %v1826 = vpop.f32.mrb[0].mxu0
    %v1827 = vadd.f32 %v1465, %v1826
    %v1828 = vpop.f32.mrb[0].mxu0
    %v1829 = vadd.f32 %v1469, %v1828
    %v1830 = vpop.f32.mrb[0].mxu0
    %v1831 = vadd.f32 %v1465, %v1830
    %v1832 = vpop.f32.mrb[0].mxu0
    %v1833 = vadd.f32 %v1469, %v1832
    %1834 = vdwg.mxu0
    %1835 = vmatprep.subr.bf16.mxu0 %v1697
    %1836 = vmatpush1.bf16.msra.mxu0 %v1696
    %1837 = vmatprep.subr.bf16.mxu0 %v1699
    %1838 = vmatpush1.bf16.msra.mxu0 %v1698
    %1839 = vmatprep.subr.bf16.mxu0 %v1701
    %1840 = vmatpush1.bf16.msra.mxu0 %v1700
    %1841 = vmatprep.subr.bf16.mxu0 %v1703
    %1842 = vmatpush1.bf16.msra.mxu0 %v1702
    %1843 = vmatprep.subr.bf16.mxu0 %v1705
    %1844 = vmatpush1.bf16.msra.mxu0 %v1704
    %1845 = vmatprep.subr.bf16.mxu0 %v1707
    %1846 = vmatpush1.bf16.msra.mxu0 %v1706
    %1847 = vmatprep.subr.bf16.mxu0 %v1709
    %1848 = vmatpush1.bf16.msra.mxu0 %v1708
    %1849 = vmatprep.subr.bf16.mxu0 %v1711
    %1850 = vmatpush1.bf16.msra.mxu0 %v1710
    %1851 = vmatprep.subr.bf16.mxu0 %v1713
    %1852 = vmatpush1.bf16.msra.mxu0 %v1712
    %1853 = vmatprep.subr.bf16.mxu0 %v1715
    %1854 = vmatpush1.bf16.msra.mxu0 %v1714
    %1855 = vmatprep.subr.bf16.mxu0 %v1717
    %1856 = vmatpush1.bf16.msra.mxu0 %v1716
    %1857 = vmatprep.subr.bf16.mxu0 %v1719
    %1858 = vmatpush1.bf16.msra.mxu0 %v1718
    %1859 = vmatprep.subr.bf16.mxu0 %v1721
    %1860 = vmatpush1.bf16.msra.mxu0 %v1720
    %1861 = vmatprep.subr.bf16.mxu0 %v1723
    %1862 = vmatpush1.bf16.msra.mxu0 %v1722
    %1863 = vmatprep.subr.bf16.mxu0 %v1725
    %1864 = vmatpush1.bf16.msra.mxu0 %v1724
    %1865 = vmatprep.subr.bf16.mxu0 %v1727
    %1866 = vmatpush1.bf16.msra.mxu0 %v1726
    %1867 = vmatprep.mubr.bf16.mxu0 %v1395
    %1868 = vmatmul.mubr.bf16.gmra.mrb[0].mxu0 %v1394
    %v1869 = vpop.f32.mrb[0].mxu0
    %v1870 = vadd.f32 %v1827, %v1869
    %v1871 = vpop.f32.mrb[0].mxu0
    %v1872 = vadd.f32 %v1829, %v1871
    %v1873 = vpop.f32.mrb[0].mxu0
    %v1874 = vadd.f32 %v1831, %v1873
    %v1875 = vpop.f32.mrb[0].mxu0
    %v1876 = vadd.f32 %v1833, %v1875
    %1877 = vdwg.mxu0
    %v1878 = vmax.f32 %v1870, 0.0
    %v1879 = vmax.f32 %v1872, 0.0
    %v1880 = vmax.f32 %v1874, 0.0
    %v1881 = vmax.f32 %v1876, 0.0
    %v1882 = vpack.c.bf16 %v1880, %v1878
    %v1883 = vpack.c.bf16 %v1881, %v1879
    %v1884 = vld [vmem:[#allocation10] sm:$0xf]
    %v1885 = vld [vmem:[#allocation10 + $0x4] sm:$0xf]
    %v1886 = vld [vmem:[#allocation10 + $0x8] sm:$0xf]
    %v1887 = vld [vmem:[#allocation10 + $0xc] sm:$0xf]
    %v1888 = vld [vmem:[#allocation10 + $0x10] sm:$0xf]
    %v1889 = vld [vmem:[#allocation10 + $0x14] sm:$0xf]
    %v1890 = vld [vmem:[#allocation10 + $0x18] sm:$0xf]
    %v1891 = vld [vmem:[#allocation10 + $0x1c] sm:$0xf]
    %v1892 = vld [vmem:[#allocation10 + $0x20] sm:$0xf]
    %v1893 = vld [vmem:[#allocation10 + $0x24] sm:$0xf]
    %v1894 = vld [vmem:[#allocation10 + $0x28] sm:$0xf]
    %v1895 = vld [vmem:[#allocation10 + $0x2c] sm:$0xf]
    %v1896 = vld [vmem:[#allocation10 + $0x30] sm:$0xf]
    %v1897 = vld [vmem:[#allocation10 + $0x34] sm:$0xf]
    %v1898 = vld [vmem:[#allocation10 + $0x38] sm:$0xf]
    %v1899 = vld [vmem:[#allocation10 + $0x3c] sm:$0xf]
    %v1900 = vld [vmem:[#allocation10 + $0x40] sm:$0xf]
    %v1901 = vld [vmem:[#allocation10 + $0x44] sm:$0xf]
    %v1902 = vld [vmem:[#allocation10 + $0x48] sm:$0xf]
    %v1903 = vld [vmem:[#allocation10 + $0x4c] sm:$0xf]
    %v1904 = vld [vmem:[#allocation10 + $0x50] sm:$0xf]
    %v1905 = vld [vmem:[#allocation10 + $0x54] sm:$0xf]
    %v1906 = vld [vmem:[#allocation10 + $0x58] sm:$0xf]
    %v1907 = vld [vmem:[#allocation10 + $0x5c] sm:$0xf]
    %v1908 = vld [vmem:[#allocation10 + $0x60] sm:$0xf]
    %v1909 = vld [vmem:[#allocation10 + $0x64] sm:$0xf]
    %v1910 = vld [vmem:[#allocation10 + $0x68] sm:$0xf]
    %v1911 = vld [vmem:[#allocation10 + $0x6c] sm:$0xf]
    %v1912 = vld [vmem:[#allocation10 + $0x70] sm:$0xf]
    %v1913 = vld [vmem:[#allocation10 + $0x74] sm:$0xf]
    %v1914 = vld [vmem:[#allocation10 + $0x78] sm:$0xf]
    %v1915 = vld [vmem:[#allocation10 + $0x7c] sm:$0xf]
    %v1916 = vld [vmem:[%s8] sm:$0x1]
    %v1918 = vlaneseq
    %v1919 = vshrl.u32 %v1918, 7
    %v1920 = vsub.s32 0, %v1919
    %v1921 = vrot.slane %v1916, %v1920
    %v1955 = vunpack.c.l.b16 %v1884
    %v1956 = vunpack.c.l.b16 %v1885
    %v1957 = vunpack.c.l.b16 %v1886
    %v1958 = vunpack.c.l.b16 %v1887
    %v1959 = vunpack.c.l.b16 %v1888
    %v1960 = vunpack.c.l.b16 %v1889
    %v1961 = vunpack.c.l.b16 %v1890
    %v1962 = vunpack.c.l.b16 %v1891
    %v1963 = vunpack.c.l.b16 %v1892
    %v1964 = vunpack.c.l.b16 %v1893
    %v1965 = vunpack.c.l.b16 %v1894
    %v1966 = vunpack.c.l.b16 %v1895
    %v1967 = vunpack.c.l.b16 %v1896
    %v1968 = vunpack.c.l.b16 %v1897
    %v1969 = vunpack.c.l.b16 %v1898
    %v1970 = vunpack.c.l.b16 %v1899
    %v1971 = vunpack.c.l.b16 %v1900
    %v1972 = vunpack.c.l.b16 %v1901
    %v1973 = vunpack.c.l.b16 %v1902
    %v1974 = vunpack.c.l.b16 %v1903
    %v1975 = vunpack.c.l.b16 %v1904
    %v1976 = vunpack.c.l.b16 %v1905
    %v1977 = vunpack.c.l.b16 %v1906
    %v1978 = vunpack.c.l.b16 %v1907
    %v1979 = vunpack.c.l.b16 %v1908
    %v1980 = vunpack.c.l.b16 %v1909
    %v1981 = vunpack.c.l.b16 %v1910
    %v1982 = vunpack.c.l.b16 %v1911
    %v1983 = vunpack.c.l.b16 %v1912
    %v1984 = vunpack.c.l.b16 %v1913
    %v1985 = vunpack.c.l.b16 %v1914
    %v1986 = vunpack.c.l.b16 %v1915
    %v1987 = vpack.c.b16 %v1956, %v1955
    %v1988 = vpack.c.b16 %v1958, %v1957
    %v1989 = vpack.c.b16 %v1960, %v1959
    %v1990 = vpack.c.b16 %v1962, %v1961
    %v1991 = vpack.c.b16 %v1964, %v1963
    %v1992 = vpack.c.b16 %v1966, %v1965
    %v1993 = vpack.c.b16 %v1968, %v1967
    %v1994 = vpack.c.b16 %v1970, %v1969
    %v1995 = vpack.c.b16 %v1972, %v1971
    %v1996 = vpack.c.b16 %v1974, %v1973
    %v1997 = vpack.c.b16 %v1976, %v1975
    %v1998 = vpack.c.b16 %v1978, %v1977
    %v1999 = vpack.c.b16 %v1980, %v1979
    %v2000 = vpack.c.b16 %v1982, %v1981
    %v2001 = vpack.c.b16 %v1984, %v1983
    %v2002 = vpack.c.b16 %v1986, %v1985
    %2019 = vmatprep.subr.bf16.mxu0 0
    %2020 = vmatpush1.bf16.msra.mxu0 %v1987
    %2021 = vmatprep.subr.bf16.mxu0 0
    %2022 = vmatpush1.bf16.msra.mxu0 %v1988
    %2023 = vmatprep.subr.bf16.mxu0 0
    %2024 = vmatpush1.bf16.msra.mxu0 %v1989
    %2025 = vmatprep.subr.bf16.mxu0 0
    %2026 = vmatpush1.bf16.msra.mxu0 %v1990
    %2027 = vmatprep.subr.bf16.mxu0 0
    %2028 = vmatpush1.bf16.msra.mxu0 %v1991
    %2029 = vmatprep.subr.bf16.mxu0 0
    %2030 = vmatpush1.bf16.msra.mxu0 %v1992
    %2031 = vmatprep.subr.bf16.mxu0 0
    %2032 = vmatpush1.bf16.msra.mxu0 %v1993
    %2033 = vmatprep.subr.bf16.mxu0 0
    %2034 = vmatpush1.bf16.msra.mxu0 %v1994
    %2035 = vmatprep.subr.bf16.mxu0 0
    %2036 = vmatpush1.bf16.msra.mxu0 %v1995
    %2037 = vmatprep.subr.bf16.mxu0 0
    %2038 = vmatpush1.bf16.msra.mxu0 %v1996
    %2039 = vmatprep.subr.bf16.mxu0 0
    %2040 = vmatpush1.bf16.msra.mxu0 %v1997
    %2041 = vmatprep.subr.bf16.mxu0 0
    %2042 = vmatpush1.bf16.msra.mxu0 %v1998
    %2043 = vmatprep.subr.bf16.mxu0 0
    %2044 = vmatpush1.bf16.msra.mxu0 %v1999
    %2045 = vmatprep.subr.bf16.mxu0 0
    %2046 = vmatpush1.bf16.msra.mxu0 %v2000
    %2047 = vmatprep.subr.bf16.mxu0 0
    %2048 = vmatpush1.bf16.msra.mxu0 %v2001
    %2049 = vmatprep.subr.bf16.mxu0 0
    %2050 = vmatpush1.bf16.msra.mxu0 %v2002
    %2051 = vmatprep.mubr.bf16.mxu0 %v1883
    %2052 = vmatmul.mubr.bf16.gmra.mrb[0].mxu0 %v1882
    %v2053 = vpop.f32.mrb[0].mxu0
    %v2054 = vadd.f32 %v1921, %v2053
    %v2055 = vpop.f32.mrb[0].mxu0
    %v2056 = vpop.f32.mrb[0].mxu0
    %v2057 = vadd.f32 %v1921, %v2056
    %v2058 = vpop.f32.mrb[0].mxu0
    %2059 = vdwg.mxu0
    %2060 = vst [vmem:[#allocation11] sm:$0xff] %v2054
    %2061 = vst [vmem:[#allocation11 + $0x8] sm:$0xff] %v2057
    // Predicated region
    $region58: #{tpu_custom_call.1} parent=1 // pred_check
      _
    $region59: #{tpu_custom_call.1} parent=1 // pred_check_branch
      %2063 = sbr.rel (0) target = $region61
    $region60: #{tpu_custom_call.1} parent=1 // pred_region
      %s2065 = ssub.s32 256, 256
      %2066 = vsyncadd [#allocation4], %s2065
      %s2067 = sshll.u32 [#allocation11], 4
      %s2068 = int_to_ptr.vmem [resolvable:$true] %s2067
      %2073 = dma.vmem_to_hbm [thread:$0]  %s2068, 256, %s9, [#allocation4], 128, 128, 8
    $region61: #{tpu_custom_call.1} parent=1 // pred_fallthru
      _
    // Predicated region
    $region62: #{tpu_custom_call.1} parent=1 // pred_check
      _
    $region63: #{tpu_custom_call.1} parent=1 // pred_check_branch
      %2075 = sbr.rel (0) target = $region65
    $region64: #{tpu_custom_call.1} parent=1 // pred_region
      %2076 = dma.done [#allocation4], 256
    $region65: #{tpu_custom_call.1} parent=1 // pred_fallthru
      _
    %2077 = vsyncpa [#allocation3], 1
    %2078 = vsyncpa [#allocation6], 1
    %2079 = vsyncpa [#allocation9], 1
    %2080 = vsyncpa [#allocation4], 1

</llo_original>
